<compile_context>
chip_gen: v6e
topology: v6e:2x2x1
jax: 0.10.0
libtpu: 0.0.40
codegen_flags: <defaults>
</compile_context>

<pallas_src>
import math

import jax
import jax.numpy as jnp
from jax import lax
from jax.experimental import pallas as pl
from jax.experimental.pallas import tpu as pltpu


def _mha_kernel(S, H, n_heads, head_dim, inv_scale):
    """Returns a kernel closed over the static problem configuration.

    One grid step == one batch element: x block is (S, H) rows.
    """

    def kernel(x_ref, wqkv_ref, bqkv_ref, wfc_ref, bfc_ref, o_ref):
        x = x_ref[...]                                     # (S, H), input dtype

        # ---- Fused Q/K/V projection: one wide MXU matmul + one bias add ----
        qkv = jnp.dot(x, wqkv_ref[...],
                      preferred_element_type=jnp.float32) + bqkv_ref[...]

        # Slice Q/K/V; fold 1/sqrt(head_dim) into Q.  Re-cast the MXU operands
        # to the input dtype so bf16 inputs stay on the native bf16 MXU path;
        # all softmax elementwise math below remains f32.
        q = (qkv[:, 0 * H:1 * H] * inv_scale).astype(x.dtype)   # (S, H)
        k = qkv[:, 1 * H:2 * H].astype(x.dtype)                 # (S, H)
        v = qkv[:, 2 * H:3 * H].astype(x.dtype)                 # (S, H)

        # ---- Per-head attention with the output projection folded in -------
        # y accumulates  sum_h ctx_h @ Wfc[h*hd:(h+1)*hd, :]  (+ bias), so no
        # per-head context ever touches VMEM scratch and only one head's tiny
        # intermediates are live at a time.
        y = jnp.broadcast_to(bfc_ref[...], (S, H)).astype(jnp.float32)
        for h in range(n_heads):
            lo, hi = h * head_dim, (h + 1) * head_dim
            qh = q[:, lo:hi]                               # (S, hd)
            kh = k[:, lo:hi]                               # (S, hd)
            vh = v[:, lo:hi]                               # (S, hd)

            # Scores: contract head_dim directly (no materialized transpose).
            s = lax.dot_general(qh, kh, (((1,), (1,)), ((), ())),
                                preferred_element_type=jnp.float32)  # (S, S)

            # Numerically stable softmax in f32; exact normalization.
            m = jnp.max(s, axis=-1, keepdims=True)
            p = jnp.exp(s - m)
            denom = jnp.sum(p, axis=-1, keepdims=True)

            ctx = jnp.dot(p.astype(vh.dtype), vh,
                          preferred_element_type=jnp.float32)        # (S, hd)
            ctx = ctx / denom

            # Fold this head straight into the output projection accumulator.
            y = y + jnp.dot(ctx.astype(wfc_ref.dtype), wfc_ref[lo:hi, :],
                            preferred_element_type=jnp.float32)

        o_ref[...] = y.astype(o_ref.dtype)

    return kernel


def fuse_mha_params(params):
    """One-time parameter fusion — hoisted out of the per-call path."""
    H = params["wfc"].shape[0]
    return {
        "w_qkv": jnp.concatenate(
            [params["wq"], params["wk"], params["wv"]], axis=1),      # (H, 3H)
        "b_qkv": jnp.concatenate(
            [params["bq"], params["bk"], params["bv"]]).reshape(1, 3 * H),
        "w_fc": params["wfc"],                                          # (H, H)
        "b_fc": params["bfc"].reshape(1, H),
    }


def multihead_attention(x, fused, n_heads):
    """x: (B, S, H).  fused: output of fuse_mha_params (y = x@W+b convention)."""
    B, S, H = x.shape
    assert H % n_heads == 0
    head_dim = H // n_heads
    inv_scale = 1.0 / math.sqrt(float(head_dim))

    x2 = x.reshape(B * S, H)
    kernel = _mha_kernel(S, H, n_heads, head_dim, inv_scale)

    # Advisory cost estimate for the XLA scheduler.
    flops = (2 * B * S * H * (3 * H)                       # fused QKV proj
             + 4 * B * n_heads * S * S * head_dim          # QK^T + PV
             + 2 * B * S * H * H)                          # output proj
    transcendentals = B * n_heads * S * S
    bytes_accessed = 4 * (2 * B * S * H + H * 3 * H + 3 * H + H * H + H)

    out2 = pl.pallas_call(
        kernel,
        out_shape=jax.ShapeDtypeStruct((B * S, H), x.dtype),
        grid_spec=pltpu.PrefetchScalarGridSpec(
            num_scalar_prefetch=0,
            grid=(B,),                                      # one step per batch elem
            in_specs=[
                pl.BlockSpec((S, H), lambda b: (b, 0)),         # x rows of batch b
                pl.BlockSpec((H, 3 * H), lambda b: (0, 0)),     # fused W_qkv (resident)
                pl.BlockSpec((1, 3 * H), lambda b: (0, 0)),     # fused b_qkv (resident)
                pl.BlockSpec((H, H), lambda b: (0, 0)),         # W_fc       (resident)
                pl.BlockSpec((1, H), lambda b: (0, 0)),         # b_fc       (resident)
            ],
            out_specs=pl.BlockSpec((S, H), lambda b: (b, 0)),
        ),
        compiler_params=pltpu.CompilerParams(
            # "parallel" lets v7x's megacore shard batch elements across both
            # TensorCores; no effect on v5e/v6e (1 TC/chip).
            dimension_semantics=("parallel",)),
        cost_estimate=pl.CostEstimate(
            flops=flops,
            transcendentals=transcendentals,
            bytes_accessed=bytes_accessed),
    )(x2, fused["w_qkv"], fused["b_qkv"], fused["w_fc"], fused["b_fc"])

    return out2.reshape(B, S, H)


def _reference(x, params, n_heads):
    """Pure-JAX reference matching the PyTorch forward (mask=None, eval mode)."""
    B, S, H = x.shape
    hd = H // n_heads
    scale = math.sqrt(float(hd))
    hp = lax.Precision.HIGHEST
    q = jnp.dot(x, params["wq"], precision=hp) + params["bq"]
    k = jnp.dot(x, params["wk"], precision=hp) + params["bk"]
    v = jnp.dot(x, params["wv"], precision=hp) + params["bv"]

    def split(t):  # (B,S,H) -> (B, nh, S, hd)
        return t.reshape(B, S, n_heads, hd).transpose(0, 2, 1, 3)

    q, k, v = split(q), split(k), split(v)
    att = jnp.einsum("bhqd,bhkd->bhqk", q, k, precision=hp) / scale
    att = jax.nn.softmax(att, axis=-1)
    ctx = jnp.einsum("bhqk,bhkd->bhqd", att, v, precision=hp)
    ctx = ctx.transpose(0, 2, 1, 3).reshape(B, S, H)
    return jnp.dot(ctx, params["wfc"], precision=hp) + params["bfc"]


if __name__ == "__main__":
    B, S, H = 2, 8, 32
    n_heads = 4

    key = jax.random.PRNGKey(0)
    keys = jax.random.split(key, 9)

    bound = 1.0 / math.sqrt(H)  # torch.nn.Linear default init range
    params = {
        "wq": jax.random.uniform(keys[0], (H, H), jnp.float32, -bound, bound),
        "bq": jax.random.uniform(keys[1], (H,), jnp.float32, -bound, bound),
        "wk": jax.random.uniform(keys[2], (H, H), jnp.float32, -bound, bound),
        "bk": jax.random.uniform(keys[3], (H,), jnp.float32, -bound, bound),
        "wv": jax.random.uniform(keys[4], (H, H), jnp.float32, -bound, bound),
        "bv": jax.random.uniform(keys[5], (H,), jnp.float32, -bound, bound),
        "wfc": jax.random.uniform(keys[6], (H, H), jnp.float32, -bound, bound),
        "bfc": jax.random.uniform(keys[7], (H,), jnp.float32, -bound, bound),
    }
    x = jax.random.normal(keys[8], (B, S, H), jnp.float32)

    fused = fuse_mha_params(params)          # one-time fusion, outside the call path
    out = multihead_attention(x, fused, n_heads)
    out = jax.block_until_ready(out)

    ref = _reference(x, params, n_heads)
    assert out.shape == (B, S, H)
    # Softmax normalization is now exact; residual tolerance only covers MXU
    # f32 multi-pass accumulation-order differences vs the XLA reference.
    assert jnp.allclose(out, ref, atol=1e-3, rtol=1e-3), (
        float(jnp.max(jnp.abs(out - ref))))

    print("KERNEL_OK")
</pallas_src>

<mosaic_0001>
module attributes {stable_mosaic.version = 11 : i64} {
  func.func @kernel(%arg0: i32, %arg1: memref<8x32xf32, #tpu.memory_space<vmem>>, %arg2: memref<32x96xf32, #tpu.memory_space<vmem>>, %arg3: memref<1x96xf32, #tpu.memory_space<vmem>>, %arg4: memref<32x32xf32, #tpu.memory_space<vmem>>, %arg5: memref<1x32xf32, #tpu.memory_space<vmem>>, %arg6: memref<8x32xf32, #tpu.memory_space<vmem>>) attributes {dimension_semantics = [#tpu.dimension_semantics<parallel>], iteration_bounds = array<i64: 2>, scalar_prefetch = 0 : i64, scratch_operands = 0 : i64, tpu.core_type = #tpu.core_type<tc>, window_params = [{transform_indices = @transform_0, window_bounds = array<i64: 8, 32>}, {pipeline_mode = #tpu.pipeline_mode<synchronous>, transform_indices = @transform_1, window_bounds = array<i64: 32, 96>}, {pipeline_mode = #tpu.pipeline_mode<synchronous>, transform_indices = @transform_2, window_bounds = array<i64: 1, 96>}, {pipeline_mode = #tpu.pipeline_mode<synchronous>, transform_indices = @transform_3, window_bounds = array<i64: 32, 32>}, {pipeline_mode = #tpu.pipeline_mode<synchronous>, transform_indices = @transform_4, window_bounds = array<i64: 1, 32>}, {transform_indices = @transform_5, window_bounds = array<i64: 8, 32>}]} {
    %c0 = arith.constant 0 : index
    %c0_0 = arith.constant 0 : index
    %0 = vector.load %arg1[%c0, %c0_0] : memref<8x32xf32, #tpu.memory_space<vmem>>, vector<8x32xf32>
    %c0_1 = arith.constant 0 : index
    %c0_2 = arith.constant 0 : index
    %1 = vector.load %arg2[%c0_1, %c0_2] : memref<32x96xf32, #tpu.memory_space<vmem>>, vector<32x96xf32>
    %cst = arith.constant dense<0.000000e+00> : vector<8x96xf32>
    %2 = tpu.matmul %0, %1, %cst {dimension_numbers = #tpu.dot_dimension_numbers<[1], [0], [0], [1], [0, 0, 1, 1], [], []>} : vector<8x32xf32>, vector<32x96xf32>, vector<8x96xf32> -> vector<8x96xf32>
    %c0_3 = arith.constant 0 : index
    %c0_4 = arith.constant 0 : index
    %3 = vector.load %arg3[%c0_3, %c0_4] : memref<1x96xf32, #tpu.memory_space<vmem>>, vector<1x96xf32>
    %4 = vector.broadcast %3 : vector<1x96xf32> to vector<8x96xf32>
    %5 = arith.addf %2, %4 : vector<8x96xf32>
    %6 = vector.extract_strided_slice %5 {offsets = [0, 0], sizes = [8, 32], strides = [1, 1]} : vector<8x96xf32> to vector<8x32xf32>
    %cst_5 = arith.constant 0.353553385 : f32
    %7 = vector.broadcast %cst_5 : f32 to vector<8x32xf32>
    %8 = arith.mulf %6, %7 : vector<8x32xf32>
    %9 = vector.extract_strided_slice %5 {offsets = [0, 32], sizes = [8, 32], strides = [1, 1]} : vector<8x96xf32> to vector<8x32xf32>
    %10 = vector.extract_strided_slice %5 {offsets = [0, 64], sizes = [8, 32], strides = [1, 1]} : vector<8x96xf32> to vector<8x32xf32>
    %c0_6 = arith.constant 0 : index
    %c0_7 = arith.constant 0 : index
    %11 = vector.load %arg5[%c0_6, %c0_7] : memref<1x32xf32, #tpu.memory_space<vmem>>, vector<1x32xf32>
    %12 = vector.shape_cast %11 : vector<1x32xf32> to vector<1x32xf32>
    %13 = vector.broadcast %12 : vector<1x32xf32> to vector<8x32xf32>
    %14 = vector.extract_strided_slice %8 {offsets = [0, 0], sizes = [8, 8], strides = [1, 1]} : vector<8x32xf32> to vector<8x8xf32>
    %15 = vector.extract_strided_slice %9 {offsets = [0, 0], sizes = [8, 8], strides = [1, 1]} : vector<8x32xf32> to vector<8x8xf32>
    %16 = vector.extract_strided_slice %10 {offsets = [0, 0], sizes = [8, 8], strides = [1, 1]} : vector<8x32xf32> to vector<8x8xf32>
    %cst_8 = arith.constant dense<0.000000e+00> : vector<8x8xf32>
    %17 = tpu.matmul %14, %15, %cst_8 {dimension_numbers = #tpu.dot_dimension_numbers<[1], [1], [0], [0], [0, 0, 1, 0], [], []>} : vector<8x8xf32>, vector<8x8xf32>, vector<8x8xf32> -> vector<8x8xf32>
    %cst_9 = arith.constant dense<0xFF800000> : vector<8xf32>
    %18 = vector.multi_reduction <maximumf>, %17, %cst_9 [1] : vector<8x8xf32> to vector<8xf32>
    %19 = vector.shape_cast %18 : vector<8xf32> to vector<8x1xf32>
    %20 = vector.broadcast %19 : vector<8x1xf32> to vector<8x8xf32>
    %21 = arith.subf %17, %20 : vector<8x8xf32>
    %22 = math.exp %21 : vector<8x8xf32>
    %cst_10 = arith.constant dense<0.000000e+00> : vector<8xf32>
    %23 = vector.multi_reduction <add>, %22, %cst_10 [1] : vector<8x8xf32> to vector<8xf32>
    %24 = vector.shape_cast %23 : vector<8xf32> to vector<8x1xf32>
    %cst_11 = arith.constant dense<0.000000e+00> : vector<8x8xf32>
    %25 = tpu.matmul %22, %16, %cst_11 {dimension_numbers = #tpu.dot_dimension_numbers<[1], [0], [0], [1], [0, 0, 1, 1], [], []>} : vector<8x8xf32>, vector<8x8xf32>, vector<8x8xf32> -> vector<8x8xf32>
    %26 = vector.broadcast %24 : vector<8x1xf32> to vector<8x8xf32>
    %27 = arith.divf %25, %26 : vector<8x8xf32>
    %c0_12 = arith.constant 0 : index
    %c0_13 = arith.constant 0 : index
    %28 = vector.load %arg4[%c0_12, %c0_13] : memref<32x32xf32, #tpu.memory_space<vmem>>, vector<8x32xf32>
    %cst_14 = arith.constant dense<0.000000e+00> : vector<8x32xf32>
    %29 = tpu.matmul %27, %28, %cst_14 {dimension_numbers = #tpu.dot_dimension_numbers<[1], [0], [0], [1], [0, 0, 1, 1], [], []>} : vector<8x8xf32>, vector<8x32xf32>, vector<8x32xf32> -> vector<8x32xf32>
    %30 = arith.addf %13, %29 : vector<8x32xf32>
    %31 = vector.extract_strided_slice %8 {offsets = [0, 8], sizes = [8, 8], strides = [1, 1]} : vector<8x32xf32> to vector<8x8xf32>
    %32 = vector.extract_strided_slice %9 {offsets = [0, 8], sizes = [8, 8], strides = [1, 1]} : vector<8x32xf32> to vector<8x8xf32>
    %33 = vector.extract_strided_slice %10 {offsets = [0, 8], sizes = [8, 8], strides = [1, 1]} : vector<8x32xf32> to vector<8x8xf32>
    %cst_15 = arith.constant dense<0.000000e+00> : vector<8x8xf32>
    %34 = tpu.matmul %31, %32, %cst_15 {dimension_numbers = #tpu.dot_dimension_numbers<[1], [1], [0], [0], [0, 0, 1, 0], [], []>} : vector<8x8xf32>, vector<8x8xf32>, vector<8x8xf32> -> vector<8x8xf32>
    %cst_16 = arith.constant dense<0xFF800000> : vector<8xf32>
    %35 = vector.multi_reduction <maximumf>, %34, %cst_16 [1] : vector<8x8xf32> to vector<8xf32>
    %36 = vector.shape_cast %35 : vector<8xf32> to vector<8x1xf32>
    %37 = vector.broadcast %36 : vector<8x1xf32> to vector<8x8xf32>
    %38 = arith.subf %34, %37 : vector<8x8xf32>
    %39 = math.exp %38 : vector<8x8xf32>
    %cst_17 = arith.constant dense<0.000000e+00> : vector<8xf32>
    %40 = vector.multi_reduction <add>, %39, %cst_17 [1] : vector<8x8xf32> to vector<8xf32>
    %41 = vector.shape_cast %40 : vector<8xf32> to vector<8x1xf32>
    %cst_18 = arith.constant dense<0.000000e+00> : vector<8x8xf32>
    %42 = tpu.matmul %39, %33, %cst_18 {dimension_numbers = #tpu.dot_dimension_numbers<[1], [0], [0], [1], [0, 0, 1, 1], [], []>} : vector<8x8xf32>, vector<8x8xf32>, vector<8x8xf32> -> vector<8x8xf32>
    %43 = vector.broadcast %41 : vector<8x1xf32> to vector<8x8xf32>
    %44 = arith.divf %42, %43 : vector<8x8xf32>
    %c8 = arith.constant 8 : index
    %c0_19 = arith.constant 0 : index
    %45 = vector.load %arg4[%c8, %c0_19] : memref<32x32xf32, #tpu.memory_space<vmem>>, vector<8x32xf32>
    %cst_20 = arith.constant dense<0.000000e+00> : vector<8x32xf32>
    %46 = tpu.matmul %44, %45, %cst_20 {dimension_numbers = #tpu.dot_dimension_numbers<[1], [0], [0], [1], [0, 0, 1, 1], [], []>} : vector<8x8xf32>, vector<8x32xf32>, vector<8x32xf32> -> vector<8x32xf32>
    %47 = arith.addf %30, %46 : vector<8x32xf32>
    %48 = vector.extract_strided_slice %8 {offsets = [0, 16], sizes = [8, 8], strides = [1, 1]} : vector<8x32xf32> to vector<8x8xf32>
    %49 = vector.extract_strided_slice %9 {offsets = [0, 16], sizes = [8, 8], strides = [1, 1]} : vector<8x32xf32> to vector<8x8xf32>
    %50 = vector.extract_strided_slice %10 {offsets = [0, 16], sizes = [8, 8], strides = [1, 1]} : vector<8x32xf32> to vector<8x8xf32>
    %cst_21 = arith.constant dense<0.000000e+00> : vector<8x8xf32>
    %51 = tpu.matmul %48, %49, %cst_21 {dimension_numbers = #tpu.dot_dimension_numbers<[1], [1], [0], [0], [0, 0, 1, 0], [], []>} : vector<8x8xf32>, vector<8x8xf32>, vector<8x8xf32> -> vector<8x8xf32>
    %cst_22 = arith.constant dense<0xFF800000> : vector<8xf32>
    %52 = vector.multi_reduction <maximumf>, %51, %cst_22 [1] : vector<8x8xf32> to vector<8xf32>
    %53 = vector.shape_cast %52 : vector<8xf32> to vector<8x1xf32>
    %54 = vector.broadcast %53 : vector<8x1xf32> to vector<8x8xf32>
    %55 = arith.subf %51, %54 : vector<8x8xf32>
    %56 = math.exp %55 : vector<8x8xf32>
    %cst_23 = arith.constant dense<0.000000e+00> : vector<8xf32>
    %57 = vector.multi_reduction <add>, %56, %cst_23 [1] : vector<8x8xf32> to vector<8xf32>
    %58 = vector.shape_cast %57 : vector<8xf32> to vector<8x1xf32>
    %cst_24 = arith.constant dense<0.000000e+00> : vector<8x8xf32>
    %59 = tpu.matmul %56, %50, %cst_24 {dimension_numbers = #tpu.dot_dimension_numbers<[1], [0], [0], [1], [0, 0, 1, 1], [], []>} : vector<8x8xf32>, vector<8x8xf32>, vector<8x8xf32> -> vector<8x8xf32>
    %60 = vector.broadcast %58 : vector<8x1xf32> to vector<8x8xf32>
    %61 = arith.divf %59, %60 : vector<8x8xf32>
    %c16 = arith.constant 16 : index
    %c0_25 = arith.constant 0 : index
    %62 = vector.load %arg4[%c16, %c0_25] : memref<32x32xf32, #tpu.memory_space<vmem>>, vector<8x32xf32>
    %cst_26 = arith.constant dense<0.000000e+00> : vector<8x32xf32>
    %63 = tpu.matmul %61, %62, %cst_26 {dimension_numbers = #tpu.dot_dimension_numbers<[1], [0], [0], [1], [0, 0, 1, 1], [], []>} : vector<8x8xf32>, vector<8x32xf32>, vector<8x32xf32> -> vector<8x32xf32>
    %64 = arith.addf %47, %63 : vector<8x32xf32>
    %65 = vector.extract_strided_slice %8 {offsets = [0, 24], sizes = [8, 8], strides = [1, 1]} : vector<8x32xf32> to vector<8x8xf32>
    %66 = vector.extract_strided_slice %9 {offsets = [0, 24], sizes = [8, 8], strides = [1, 1]} : vector<8x32xf32> to vector<8x8xf32>
    %67 = vector.extract_strided_slice %10 {offsets = [0, 24], sizes = [8, 8], strides = [1, 1]} : vector<8x32xf32> to vector<8x8xf32>
    %cst_27 = arith.constant dense<0.000000e+00> : vector<8x8xf32>
    %68 = tpu.matmul %65, %66, %cst_27 {dimension_numbers = #tpu.dot_dimension_numbers<[1], [1], [0], [0], [0, 0, 1, 0], [], []>} : vector<8x8xf32>, vector<8x8xf32>, vector<8x8xf32> -> vector<8x8xf32>
    %cst_28 = arith.constant dense<0xFF800000> : vector<8xf32>
    %69 = vector.multi_reduction <maximumf>, %68, %cst_28 [1] : vector<8x8xf32> to vector<8xf32>
    %70 = vector.shape_cast %69 : vector<8xf32> to vector<8x1xf32>
    %71 = vector.broadcast %70 : vector<8x1xf32> to vector<8x8xf32>
    %72 = arith.subf %68, %71 : vector<8x8xf32>
    %73 = math.exp %72 : vector<8x8xf32>
    %cst_29 = arith.constant dense<0.000000e+00> : vector<8xf32>
    %74 = vector.multi_reduction <add>, %73, %cst_29 [1] : vector<8x8xf32> to vector<8xf32>
    %75 = vector.shape_cast %74 : vector<8xf32> to vector<8x1xf32>
    %cst_30 = arith.constant dense<0.000000e+00> : vector<8x8xf32>
    %76 = tpu.matmul %73, %67, %cst_30 {dimension_numbers = #tpu.dot_dimension_numbers<[1], [0], [0], [1], [0, 0, 1, 1], [], []>} : vector<8x8xf32>, vector<8x8xf32>, vector<8x8xf32> -> vector<8x8xf32>
    %77 = vector.broadcast %75 : vector<8x1xf32> to vector<8x8xf32>
    %78 = arith.divf %76, %77 : vector<8x8xf32>
    %c24 = arith.constant 24 : index
    %c0_31 = arith.constant 0 : index
    %79 = vector.load %arg4[%c24, %c0_31] : memref<32x32xf32, #tpu.memory_space<vmem>>, vector<8x32xf32>
    %cst_32 = arith.constant dense<0.000000e+00> : vector<8x32xf32>
    %80 = tpu.matmul %78, %79, %cst_32 {dimension_numbers = #tpu.dot_dimension_numbers<[1], [0], [0], [1], [0, 0, 1, 1], [], []>} : vector<8x8xf32>, vector<8x32xf32>, vector<8x32xf32> -> vector<8x32xf32>
    %81 = arith.addf %64, %80 : vector<8x32xf32>
    %c0_33 = arith.constant 0 : index
    %c0_34 = arith.constant 0 : index
    %82 = vector.load %arg6[%c0_33, %c0_34] : memref<8x32xf32, #tpu.memory_space<vmem>>, vector<8x32xf32>
    tpu.vector_store %arg6[%c0_33, %c0_34], %81 {strides = array<i32>} : memref<8x32xf32, #tpu.memory_space<vmem>>, vector<8x32xf32>,
    return
  }
  func.func @transform_0(%arg0: i32) -> (i32, i32) {
    %c0_i32 = arith.constant 0 : i32
    %c0_i32_0 = arith.constant 0 : i32
    return %arg0, %c0_i32 : i32, i32
  }
  func.func @transform_1(%arg0: i32) -> (i32, i32) {
    %c0_i32 = arith.constant 0 : i32
    %c0_i32_0 = arith.constant 0 : i32
    %c0_i32_1 = arith.constant 0 : i32
    return %c0_i32, %c0_i32_0 : i32, i32
  }
  func.func @transform_2(%arg0: i32) -> (i32, i32) {
    %c0_i32 = arith.constant 0 : i32
    %c0_i32_0 = arith.constant 0 : i32
    %c0_i32_1 = arith.constant 0 : i32
    return %c0_i32, %c0_i32_0 : i32, i32
  }
  func.func @transform_3(%arg0: i32) -> (i32, i32) {
    %c0_i32 = arith.constant 0 : i32
    %c0_i32_0 = arith.constant 0 : i32
    %c0_i32_1 = arith.constant 0 : i32
    return %c0_i32, %c0_i32_0 : i32, i32
  }
  func.func @transform_4(%arg0: i32) -> (i32, i32) {
    %c0_i32 = arith.constant 0 : i32
    %c0_i32_0 = arith.constant 0 : i32
    %c0_i32_1 = arith.constant 0 : i32
    return %c0_i32, %c0_i32_0 : i32, i32
  }
  func.func @transform_5(%arg0: i32) -> (i32, i32) {
    %c0_i32 = arith.constant 0 : i32
    %c0_i32_0 = arith.constant 0 : i32
    return %arg0, %c0_i32 : i32, i32
  }
}

</mosaic_0001>

<llo_original>
// kernel: tpu_custom_call.1
$region0: #{tpu_custom_call.1}
  #allocation0 [shape = 'u32[]', space=smem, size = 0x4, offset = 0x4, fixed_abs, tag = 'smem constant byte address 0x4 - core index']
  #allocation1 [shape = 'u32[144,128]{1,0:T(1,128)}', space=vmem, size = 0x12000, scoped, tag = 'internal scratch']
  %s0 = inlined_call_operand.hbm [shape: f32[16,32], index: 0, kind: input, shape index: {}]
  %s1 = inlined_call_operand.hbm [shape: f32[32,96], index: 1, kind: input, shape index: {}]
  %s2 = inlined_call_operand.vmem [shape: f32[1,96], index: 2, kind: input, shape index: {}]
  %s3 = inlined_call_operand.hbm [shape: f32[32,32], index: 3, kind: input, shape index: {}]
  %s4 = inlined_call_operand.vmem [shape: f32[1,32], index: 4, kind: input, shape index: {}]
  %s5 = inlined_call_operand.hbm [shape: f32[16,32], index: 5, kind: output, shape index: {}]
  %s6 = sld [smem:[#allocation0]]
  $region65: #{tpu_custom_call.1} parent=0
    _
  %s8 = ssub.s32 1, %s6
  %s9 = scalar_select 0, %s8, %s6
  $region1: #{tpu_custom_call.1} parent=0
    #allocation2 [shape = 'u8[8192]{0}', space=vmem, size = 0x2000, scoped, tag = 'input window, operand 0']
    #allocation3 [shape = 's32[2]{0}', space=sflag, size = 0x8, scoped, tag = 'scoped memory for tpu_custom_call.1']
    #allocation4 [shape = 's32[2]{0}', space=sflag, size = 0x8, scoped, tag = 'scoped memory for tpu_custom_call.1']
    #allocation5 [shape = 'u8[16384]{0}', space=vmem, size = 0x4000, scoped, tag = 'input window, operand 1, single buffered']
    #allocation6 [shape = 's32[1]{0}', space=sflag, size = 0x4, scoped, tag = 'scoped memory for tpu_custom_call.1']
    #allocation7 [shape = 'u8[16384]{0}', space=vmem, size = 0x4000, scoped, tag = 'input window, operand 3, single buffered']
    #allocation8 [shape = 'u8[8192]{0}', space=vmem, size = 0x2000, scoped, tag = 'output window, operand 0']
    %10 = vsyncpa [#allocation3], 0
    %s11 = scalar_lea.sflag [#allocation3], 1
    %12 = vsyncpa %s11, 0
    %13 = vsyncpa [#allocation6], 0
    %14 = vsyncpa [#allocation4], 0
    %s15 = scalar_lea.sflag [#allocation4], 1
    %16 = vsyncpa %s15, 0
    loop: start=0, step=1, limit=4
    $region2: #{tpu_custom_call.1} parent=1 // loop_pre_header
      _
    $region3: #{tpu_custom_call.1} parent=1 // loop_header
      %s18 = sphi 0, %s22
      %p19 = scmp.ge.s32.totalorder %s18, 4
      %s28 = sphi 0, %s30
      %s31 = sphi 0, %s28
      %s32 = sphi 0, %s31
      %s48 = sphi 0, %s32
      %s52 = sphi 0, %s52
      %s54 = sphi 0, %s52
      %s55 = sphi 0, %s54
      %s69 = sphi 0, %s55
      %s73 = sphi 0, %s73
      %s75 = sphi 0, %s73
      %s76 = sphi 0, %s75
      %s90 = sphi 0, %s76
      %s94 = sphi 0, %s94
      %s96 = sphi 0, %s94
      %s97 = sphi 0, %s96
      %s111 = sphi 0, %s97
      %s115 = sphi 0, %s115
      %s117 = sphi 0, %s115
      %s118 = sphi 0, %s117
      %s132 = sphi 0, %s118
      %s138 = sphi 0, %s140
      %s141 = sphi 0, %s138
      %s142 = sphi 0, %s141
      %s158 = sphi 0, %s142
    $region4: #{tpu_custom_call.1} parent=1 // loop_header_branch
      %21 = sbr.rel (%p19) target = $region8
    $region5: #{tpu_custom_call.1} parent=1 // loop_body
      %s23 = ssub.s32 %s18, 1
      %s24 = ssub.s32 %s18, 2
      %s25 = sadd.s32 %s18, 1
      %s26 = ssub.s32 %s18, %s25
      %p27 = scmp.eq.s32.totalorder %s26, 0
      %s29 = sadd.s32 %s28, 1
      %s30 = scalar_select %p27, %s28, %s29
      %p33 = pneg %p27
      %p34 = scmp.eq.s32.totalorder %s18, 1
      %p35 = por %p33, %p34
      %p36 = scmp.ne.s32.totalorder %s28, %s31
      %p37 = scmp.eq.s32.totalorder %s18, 0
      %p38 = por %p36, %p37
      %p39 = scmp.ne.s32.totalorder %s28, %s31
      %p40 = scmp.eq.s32.totalorder %s23, 1
      %p41 = por %p39, %p40
      %p42 = scmp.ne.s32.totalorder %s31, %s32
      %p43 = scmp.eq.s32.totalorder %s23, 0
      %p44 = por %p42, %p43
      %p45 = scmp.ne.s32.totalorder %s31, %s32
      %p46 = scmp.eq.s32.totalorder %s24, 1
      %p47 = por %p45, %p46
      %p49 = scmp.ne.s32.totalorder %s32, %s48
      %p50 = scmp.eq.s32.totalorder %s24, 0
      %p51 = por %p49, %p50
      %s53 = sadd.s32 %s52, 1
      %p56 = scmp.eq.s32.totalorder %s18, 1
      %p57 = scmp.ne.s32.totalorder %s52, %s54
      %p58 = scmp.eq.s32.totalorder %s18, 0
      %p59 = por %p57, %p58
      %p60 = scmp.ne.s32.totalorder %s52, %s54
      %p61 = scmp.eq.s32.totalorder %s23, 1
      %p62 = por %p60, %p61
      %p63 = scmp.ne.s32.totalorder %s54, %s55
      %p64 = scmp.eq.s32.totalorder %s23, 0
      %p65 = por %p63, %p64
      %p66 = scmp.ne.s32.totalorder %s54, %s55
      %p67 = scmp.eq.s32.totalorder %s24, 1
      %p68 = por %p66, %p67
      %p70 = scmp.ne.s32.totalorder %s55, %s69
      %p71 = scmp.eq.s32.totalorder %s24, 0
      %p72 = por %p70, %p71
      %s74 = sadd.s32 %s73, 1
      %p77 = scmp.eq.s32.totalorder %s18, 1
      %p78 = scmp.ne.s32.totalorder %s73, %s75
      %p79 = scmp.eq.s32.totalorder %s18, 0
      %p80 = por %p78, %p79
      %p81 = scmp.ne.s32.totalorder %s73, %s75
      %p82 = scmp.eq.s32.totalorder %s23, 1
      %p83 = por %p81, %p82
      %p84 = scmp.ne.s32.totalorder %s75, %s76
      %p85 = scmp.eq.s32.totalorder %s23, 0
      %p86 = por %p84, %p85
      %p87 = scmp.ne.s32.totalorder %s75, %s76
      %p88 = scmp.eq.s32.totalorder %s24, 1
      %p89 = por %p87, %p88
      %p91 = scmp.ne.s32.totalorder %s76, %s90
      %p92 = scmp.eq.s32.totalorder %s24, 0
      %p93 = por %p91, %p92
      %s95 = sadd.s32 %s94, 1
      %p98 = scmp.eq.s32.totalorder %s18, 1
      %p99 = scmp.ne.s32.totalorder %s94, %s96
      %p100 = scmp.eq.s32.totalorder %s18, 0
      %p101 = por %p99, %p100
      %p102 = scmp.ne.s32.totalorder %s94, %s96
      %p103 = scmp.eq.s32.totalorder %s23, 1
      %p104 = por %p102, %p103
      %p105 = scmp.ne.s32.totalorder %s96, %s97
      %p106 = scmp.eq.s32.totalorder %s23, 0
      %p107 = por %p105, %p106
      %p108 = scmp.ne.s32.totalorder %s96, %s97
      %p109 = scmp.eq.s32.totalorder %s24, 1
      %p110 = por %p108, %p109
      %p112 = scmp.ne.s32.totalorder %s97, %s111
      %p113 = scmp.eq.s32.totalorder %s24, 0
      %p114 = por %p112, %p113
      %s116 = sadd.s32 %s115, 1
      %p119 = scmp.eq.s32.totalorder %s18, 1
      %p120 = scmp.ne.s32.totalorder %s115, %s117
      %p121 = scmp.eq.s32.totalorder %s18, 0
      %p122 = por %p120, %p121
      %p123 = scmp.ne.s32.totalorder %s115, %s117
      %p124 = scmp.eq.s32.totalorder %s23, 1
      %p125 = por %p123, %p124
      %p126 = scmp.ne.s32.totalorder %s117, %s118
      %p127 = scmp.eq.s32.totalorder %s23, 0
      %p128 = por %p126, %p127
      %p129 = scmp.ne.s32.totalorder %s117, %s118
      %p130 = scmp.eq.s32.totalorder %s24, 1
      %p131 = por %p129, %p130
      %p133 = scmp.ne.s32.totalorder %s118, %s132
      %p134 = scmp.eq.s32.totalorder %s24, 0
      %p135 = por %p133, %p134
      %s136 = ssub.s32 %s18, %s25
      %p137 = scmp.eq.s32.totalorder %s136, 0
      %s139 = sadd.s32 %s138, 1
      %s140 = scalar_select %p137, %s138, %s139
      %p143 = pneg %p137
      %p144 = scmp.eq.s32.totalorder %s18, 1
      %p145 = por %p143, %p144
      %p146 = scmp.ne.s32.totalorder %s138, %s141
      %p147 = scmp.eq.s32.totalorder %s18, 0
      %p148 = por %p146, %p147
      %p149 = scmp.ne.s32.totalorder %s138, %s141
      %p150 = scmp.eq.s32.totalorder %s23, 1
      %p151 = por %p149, %p150
      %p152 = scmp.ne.s32.totalorder %s141, %s142
      %p153 = scmp.eq.s32.totalorder %s23, 0
      %p154 = por %p152, %p153
      %p155 = scmp.ne.s32.totalorder %s141, %s142
      %p156 = scmp.eq.s32.totalorder %s24, 1
      %p157 = por %p155, %p156
      %p159 = scmp.ne.s32.totalorder %s142, %s158
      %p160 = scmp.eq.s32.totalorder %s24, 0
      %p161 = por %p159, %p160
      %p162 = scmp.le.s32.totalorder 1, %s18
      %p163 = scmp.lt.s32.totalorder %s18, 3
      %p164 = pnand %p162, %p163
      %p165 = pneg %p164
      // Predicated region
      $region9: #{tpu_custom_call.1} parent=5 // pred_check
        _
      $region10: #{tpu_custom_call.1} parent=5 // pred_check_branch
        %167 = sbr.rel (%p164) target = $region12
      $region11: #{tpu_custom_call.1} parent=5 // pred_region
        %s168 = ssub.s32 %s18, 1
        // Predicated region
        $region13: #{tpu_custom_call.1} parent=11 // pred_check
          %p169 = pneg %p65
        $region14: #{tpu_custom_call.1} parent=11 // pred_check_branch
          %171 = sbr.rel (%p169) target = $region16
        $region15: #{tpu_custom_call.1} parent=11 // pred_region
          %s173 = ssub.s32 512, 512
          %174 = vsyncadd [#allocation6], %s173
          %s175 = sshll.u32 [#allocation5], 4
          %s176 = int_to_ptr.vmem [resolvable:$true] %s175
          %181 = dma.hbm_to_vmem [thread:$0]  %s1, 512, %s176, [#allocation6], 128, 128, 8
        $region16: #{tpu_custom_call.1} parent=11 // pred_fallthru
          _
        // Predicated region
        $region17: #{tpu_custom_call.1} parent=11 // pred_check
          %p182 = pneg %p86
        $region18: #{tpu_custom_call.1} parent=11 // pred_check_branch
          %184 = sbr.rel (%p182) target = $region20
        $region19: #{tpu_custom_call.1} parent=11 // pred_region
          _
        $region20: #{tpu_custom_call.1} parent=11 // pred_fallthru
          _
        // Predicated region
        $region21: #{tpu_custom_call.1} parent=11 // pred_check
          %p185 = pneg %p107
        $region22: #{tpu_custom_call.1} parent=11 // pred_check_branch
          %187 = sbr.rel (%p185) target = $region24
        $region23: #{tpu_custom_call.1} parent=11 // pred_region
          %s189 = ssub.s32 512, 512
          %190 = vsyncadd [#allocation6], %s189
          %s191 = sshll.u32 [#allocation7], 4
          %s192 = int_to_ptr.vmem [resolvable:$true] %s191
          %197 = dma.hbm_to_vmem [thread:$0]  %s3, 512, %s192, [#allocation6], 128, 128, 8
        $region24: #{tpu_custom_call.1} parent=11 // pred_fallthru
          _
        // Predicated region
        $region25: #{tpu_custom_call.1} parent=11 // pred_check
          %p198 = pneg %p128
        $region26: #{tpu_custom_call.1} parent=11 // pred_check_branch
          %200 = sbr.rel (%p198) target = $region28
        $region27: #{tpu_custom_call.1} parent=11 // pred_region
          _
        $region28: #{tpu_custom_call.1} parent=11 // pred_fallthru
          _
      $region12: #{tpu_custom_call.1} parent=5 // pred_fallthru
        _
      %p201 = scmp.lt.s32.totalorder %s18, 2
      // Predicated region
      $region29: #{tpu_custom_call.1} parent=5 // pred_check
        %p202 = pneg %p201
      $region30: #{tpu_custom_call.1} parent=5 // pred_check_branch
        %204 = sbr.rel (%p202) target = $region32
      $region31: #{tpu_custom_call.1} parent=5 // pred_region
        // Predicated region
        $region33: #{tpu_custom_call.1} parent=31 // pred_check
          %p205 = pneg %p38
        $region34: #{tpu_custom_call.1} parent=31 // pred_check_branch
          %207 = sbr.rel (%p205) target = $region36
        $region35: #{tpu_custom_call.1} parent=31 // pred_region
          %s208 = sand.u32 %s28, 1
          %s209 = scalar_lea.sflag [#allocation3], %s208
          %s210 = sand.u32 %s28, 1
          %s211 = smul.addr %s210, 8
          %s212 = scalar_lea.vmem [#allocation2], %s211
          %s214 = ssub.s32 128, 128
          %215 = vsyncadd %s209, %s214
          %s216 = smul.addr %s18, 128
          %s217 = scalar_lea.hbm %s0, %s216
          %s219 = sshll.u32 %s212, 4
          %s220 = int_to_ptr.vmem [resolvable:$true] %s219
          %222 = dma.hbm_to_vmem [thread:$0]  %s217, 128, %s220, %s209
        $region36: #{tpu_custom_call.1} parent=31 // pred_fallthru
          _
      $region32: #{tpu_custom_call.1} parent=5 // pred_fallthru
        _
      %p223 = scmp.le.s32.totalorder 1, %s18
      %p224 = scmp.lt.s32.totalorder %s18, 3
      %p225 = pnand %p223, %p224
      %p226 = pneg %p225
      // Predicated region
      $region37: #{tpu_custom_call.1} parent=5 // pred_check
        _
      $region38: #{tpu_custom_call.1} parent=5 // pred_check_branch
        %228 = sbr.rel (%p225) target = $region40
      $region39: #{tpu_custom_call.1} parent=5 // pred_region
        %s229 = ssub.s32 %s18, 1
        %s230 = sand.u32 %s31, 1
        %s231 = scalar_lea.sflag [#allocation3], %s230
        %s232 = sand.u32 %s31, 1
        %s233 = smul.addr %s232, 8
        %s234 = scalar_lea.vmem [#allocation2], %s233
        // Predicated region
        $region41: #{tpu_custom_call.1} parent=39 // pred_check
          %p235 = pneg %p44
        $region42: #{tpu_custom_call.1} parent=39 // pred_check_branch
          %237 = sbr.rel (%p235) target = $region44
        $region43: #{tpu_custom_call.1} parent=39 // pred_region
          %238 = dma.done %s231, 128
        $region44: #{tpu_custom_call.1} parent=39 // pred_fallthru
          _
        // Predicated region
        $region45: #{tpu_custom_call.1} parent=39 // pred_check
          %p239 = pneg %p65
        $region46: #{tpu_custom_call.1} parent=39 // pred_check_branch
          %241 = sbr.rel (%p239) target = $region48
        $region47: #{tpu_custom_call.1} parent=39 // pred_region
          %242 = dma.done [#allocation6], 512
        $region48: #{tpu_custom_call.1} parent=39 // pred_fallthru
          _
        // Predicated region
        $region49: #{tpu_custom_call.1} parent=39 // pred_check
          %p243 = pneg %p107
        $region50: #{tpu_custom_call.1} parent=39 // pred_check_branch
          %245 = sbr.rel (%p243) target = $region52
        $region51: #{tpu_custom_call.1} parent=39 // pred_region
          %246 = dma.done [#allocation6], 512
        $region52: #{tpu_custom_call.1} parent=39 // pred_fallthru
          _
        %s247 = sand.u32 %s31, 1
        %s248 = scalar_lea.sflag [#allocation3], %s247
        %s249 = sand.u32 %s31, 1
        %s250 = smul.addr %s249, 8
        %s251 = scalar_lea.vmem [#allocation2], %s250
        %p252 = pneg %p44
        %p253 = pneg %p41
        %p254 = pneg %p65
        %p255 = pneg %p62
        %p256 = pneg %p86
        %p257 = pneg %p83
        %p258 = pneg %p107
        %p259 = pneg %p104
        %p260 = pneg %p128
        %p261 = pneg %p125
        %p262 = pneg %p154
        %p263 = pneg %p151
        %s264 = sand.u32 %s141, 1
        %s265 = scalar_lea.sflag [#allocation4], %s264
        %s266 = sand.u32 %s141, 1
        %s267 = smul.addr %s266, 8
        %s268 = scalar_lea.vmem [#allocation8], %s267
        %v269 = vld [vmem:[%s234] sm:$0xff]
        %v270 = vld [vmem:[#allocation5] sm:$0xff]
        %v271 = vld [vmem:[#allocation5 + $0x8] sm:$0xff]
        %v272 = vld [vmem:[#allocation5 + $0x10] sm:$0xff]
        %v273 = vld [vmem:[#allocation5 + $0x18] sm:$0xff]
        %v274 = vld [vmem:[%s2] sm:$0x1]
        %v276 = vlaneseq
        %v277 = vshrl.u32 %v276, 7
        %v278 = vsub.s32 0, %v277
        %v279 = vrot.slane %v274, %v278
        %vm281 = vcmask 261120
        %v283 = vsel %vm281, %v269, 0
        %285 = vmatprep.subr.mxu0 0.0
        %286 = vmatpush1.msra.mxu0 0.0
        %287 = vmatprep.subr.mxu0 0.0
        %288 = vmatpush1.msra.mxu0 0.0
        %289 = vmatprep.subr.mxu0 0.0
        %290 = vmatpush1.msra.mxu0 0.0
        %291 = vmatprep.subr.mxu0 0.0
        %292 = vmatpush1.msra.mxu0 0.0
        %293 = vmatprep.subr.mxu0 0.0
        %294 = vmatpush1.msra.mxu0 0.0
        %295 = vmatprep.subr.mxu0 0.0
        %296 = vmatpush1.msra.mxu0 0.0
        %297 = vmatprep.subr.mxu0 0.0
        %298 = vmatpush1.msra.mxu0 0.0
        %299 = vmatprep.subr.mxu0 0.0
        %300 = vmatpush1.msra.mxu0 0.0
        %301 = vmatprep.subr.mxu0 0.0
        %302 = vmatpush1.msra.mxu0 0.0
        %303 = vmatprep.subr.mxu0 0.0
        %304 = vmatpush1.msra.mxu0 0.0
        %305 = vmatprep.subr.mxu0 0.0
        %306 = vmatpush1.msra.mxu0 0.0
        %307 = vmatprep.subr.mxu0 0.0
        %308 = vmatpush1.msra.mxu0 0.0
        %309 = vmatprep.subr.mxu0 0.0
        %310 = vmatpush1.msra.mxu0 %v273
        %311 = vmatprep.subr.mxu0 0.0
        %312 = vmatpush1.msra.mxu0 %v272
        %313 = vmatprep.subr.mxu0 0.0
        %314 = vmatpush1.msra.mxu0 %v271
        %315 = vmatprep.subr.mxu0 0.0
        %316 = vmatpush1.msra.mxu0 %v270
        %317 = vmatprep.subr.mxu0 0.0
        %318 = vmatpush2.msra.mxu0 0.0
        %319 = vmatprep.subr.mxu0 0.0
        %320 = vmatpush2.msra.mxu0 0.0
        %321 = vmatprep.subr.mxu0 0.0
        %322 = vmatpush2.msra.mxu0 0.0
        %323 = vmatprep.subr.mxu0 0.0
        %324 = vmatpush2.msra.mxu0 0.0
        %325 = vmatprep.subr.mxu0 0.0
        %326 = vmatpush2.msra.mxu0 0.0
        %327 = vmatprep.subr.mxu0 0.0
        %328 = vmatpush2.msra.mxu0 0.0
        %329 = vmatprep.subr.mxu0 0.0
        %330 = vmatpush2.msra.mxu0 0.0
        %331 = vmatprep.subr.mxu0 0.0
        %332 = vmatpush2.msra.mxu0 0.0
        %333 = vmatprep.subr.mxu0 0.0
        %334 = vmatpush2.msra.mxu0 0.0
        %335 = vmatprep.subr.mxu0 0.0
        %336 = vmatpush2.msra.mxu0 0.0
        %337 = vmatprep.subr.mxu0 0.0
        %338 = vmatpush2.msra.mxu0 0.0
        %339 = vmatprep.subr.mxu0 0.0
        %340 = vmatpush2.msra.mxu0 0.0
        %341 = vmatprep.subr.mxu0 0.0
        %342 = vmatpush2.msra.mxu0 0.0
        %343 = vmatprep.subr.mxu0 0.0
        %344 = vmatpush2.msra.mxu0 0.0
        %345 = vmatprep.subr.mxu0 0.0
        %346 = vmatpush2.msra.mxu0 0.0
        %347 = vmatprep.subr.mxu0 0.0
        %348 = vmatpush2.msra.mxu0 0.0
        %349 = vmatprep.mubr.f32.mxu0 0.0
        %350 = vmatmul.mubr.f32.gmra.mxu0 %v283
        %v351 = vpop.f32.mrf.mxu0
        %v352 = vadd.f32 %v279, %v351
        %v353 = vpop.f32.mrf.mxu0
        %354 = vdwg.mxu0
        %v355 = vmul.f32 %v352, 0.35355338
        %v356 = vld [vmem:[%s4] sm:$0x1]
        %v358 = vlaneseq
        %v359 = vshrl.u32 %v358, 7
        %v360 = vsub.s32 0, %v359
        %v361 = vrot.slane %v356, %v360
        %364 = vrot.lane.b32.xlu0 %v352, 96
        %v365 = vpop.permute.xlu0 %364
        %vm366 = vcmask 64512
        %v368 = vsel %vm366, %v355, 0
        %v370 = vsel %vm366, %v365, 0
        %372 = vmatprep.subr.mxu0 0.0
        %373 = vmatpush1.xpose.msra.mxu0 0.0
        %374 = vmatprep.subr.mxu0 0.0
        %375 = vmatpush1.xpose.msra.mxu0 0.0
        %376 = vmatprep.subr.mxu0 0.0
        %377 = vmatpush1.xpose.msra.mxu0 0.0
        %378 = vmatprep.subr.mxu0 0.0
        %379 = vmatpush1.xpose.msra.mxu0 0.0
        %380 = vmatprep.subr.mxu0 0.0
        %381 = vmatpush1.xpose.msra.mxu0 0.0
        %382 = vmatprep.subr.mxu0 0.0
        %383 = vmatpush1.xpose.msra.mxu0 0.0
        %384 = vmatprep.subr.mxu0 0.0
        %385 = vmatpush1.xpose.msra.mxu0 0.0
        %386 = vmatprep.subr.mxu0 0.0
        %387 = vmatpush1.xpose.msra.mxu0 0.0
        %388 = vmatprep.subr.mxu0 0.0
        %389 = vmatpush1.xpose.msra.mxu0 0.0
        %390 = vmatprep.subr.mxu0 0.0
        %391 = vmatpush1.xpose.msra.mxu0 0.0
        %392 = vmatprep.subr.mxu0 0.0
        %393 = vmatpush1.xpose.msra.mxu0 0.0
        %394 = vmatprep.subr.mxu0 0.0
        %395 = vmatpush1.xpose.msra.mxu0 0.0
        %396 = vmatprep.subr.mxu0 0.0
        %397 = vmatpush1.xpose.msra.mxu0 0.0
        %398 = vmatprep.subr.mxu0 0.0
        %399 = vmatpush1.xpose.msra.mxu0 0.0
        %400 = vmatprep.subr.mxu0 0.0
        %401 = vmatpush1.xpose.msra.mxu0 0.0
        %402 = vmatprep.subr.mxu0 0.0
        %403 = vmatpush1.xpose.msra.mxu0 %v370
        %404 = vmatprep.subr.mxu0 0.0
        %405 = vmatpush2.xpose.msra.mxu0 0.0
        %406 = vmatprep.subr.mxu0 0.0
        %407 = vmatpush2.xpose.msra.mxu0 0.0
        %408 = vmatprep.subr.mxu0 0.0
        %409 = vmatpush2.xpose.msra.mxu0 0.0
        %410 = vmatprep.subr.mxu0 0.0
        %411 = vmatpush2.xpose.msra.mxu0 0.0
        %412 = vmatprep.subr.mxu0 0.0
        %413 = vmatpush2.xpose.msra.mxu0 0.0
        %414 = vmatprep.subr.mxu0 0.0
        %415 = vmatpush2.xpose.msra.mxu0 0.0
        %416 = vmatprep.subr.mxu0 0.0
        %417 = vmatpush2.xpose.msra.mxu0 0.0
        %418 = vmatprep.subr.mxu0 0.0
        %419 = vmatpush2.xpose.msra.mxu0 0.0
        %420 = vmatprep.subr.mxu0 0.0
        %421 = vmatpush2.xpose.msra.mxu0 0.0
        %422 = vmatprep.subr.mxu0 0.0
        %423 = vmatpush2.xpose.msra.mxu0 0.0
        %424 = vmatprep.subr.mxu0 0.0
        %425 = vmatpush2.xpose.msra.mxu0 0.0
        %426 = vmatprep.subr.mxu0 0.0
        %427 = vmatpush2.xpose.msra.mxu0 0.0
        %428 = vmatprep.subr.mxu0 0.0
        %429 = vmatpush2.xpose.msra.mxu0 0.0
        %430 = vmatprep.subr.mxu0 0.0
        %431 = vmatpush2.xpose.msra.mxu0 0.0
        %432 = vmatprep.subr.mxu0 0.0
        %433 = vmatpush2.xpose.msra.mxu0 0.0
        %434 = vmatprep.subr.mxu0 0.0
        %435 = vmatpush2.xpose.msra.mxu0 0.0
        %436 = vmatprep.mubr.f32.mxu0 0.0
        %437 = vmatmul.mubr.f32.gmra.mxu0 %v368
        %v438 = vpop.f32.mrf.mxu0
        %v439 = vadd.f32 0.0, %v438
        %v440 = vpop.f32.mrf.mxu0
        %441 = vdwg.mxu0
        %v442 = vsel %vm366, %v439, -inf
        %443 = vmax.xlane.f32.xlu0 %v442
        %v444 = vpop.xlane.xlu0 %443
        %v445 = vsub.f32 %v439, %v444
        %v446 = vmul.f32 %v445, 1.442695
        %v447 = vpow.pop %v446
        %v448 = vsel %vm366, %v447, 0.0
        %449 = vadd.xlane.f32.xlu0 %v448
        %v450 = vpop.xlane.xlu0 %449
        %451 = vrot.lane.b32.xlu0 %v352, 64
        %v452 = vpop.permute.xlu0 %451
        %v455 = vsel %vm366, %v447, 0
        %457 = vmatprep.subr.mxu0 0.0
        %458 = vmatpush1.msra.mxu0 0.0
        %459 = vmatprep.subr.mxu0 0.0
        %460 = vmatpush1.msra.mxu0 0.0
        %461 = vmatprep.subr.mxu0 0.0
        %462 = vmatpush1.msra.mxu0 0.0
        %463 = vmatprep.subr.mxu0 0.0
        %464 = vmatpush1.msra.mxu0 0.0
        %465 = vmatprep.subr.mxu0 0.0
        %466 = vmatpush1.msra.mxu0 0.0
        %467 = vmatprep.subr.mxu0 0.0
        %468 = vmatpush1.msra.mxu0 0.0
        %469 = vmatprep.subr.mxu0 0.0
        %470 = vmatpush1.msra.mxu0 0.0
        %471 = vmatprep.subr.mxu0 0.0
        %472 = vmatpush1.msra.mxu0 0.0
        %473 = vmatprep.subr.mxu0 0.0
        %474 = vmatpush1.msra.mxu0 0.0
        %475 = vmatprep.subr.mxu0 0.0
        %476 = vmatpush1.msra.mxu0 0.0
        %477 = vmatprep.subr.mxu0 0.0
        %478 = vmatpush1.msra.mxu0 0.0
        %479 = vmatprep.subr.mxu0 0.0
        %480 = vmatpush1.msra.mxu0 0.0
        %481 = vmatprep.subr.mxu0 0.0
        %482 = vmatpush1.msra.mxu0 0.0
        %483 = vmatprep.subr.mxu0 0.0
        %484 = vmatpush1.msra.mxu0 0.0
        %485 = vmatprep.subr.mxu0 0.0
        %486 = vmatpush1.msra.mxu0 0.0
        %487 = vmatprep.subr.mxu0 0.0
        %488 = vmatpush1.msra.mxu0 %v452
        %489 = vmatprep.subr.mxu0 0.0
        %490 = vmatpush2.msra.mxu0 0.0
        %491 = vmatprep.subr.mxu0 0.0
        %492 = vmatpush2.msra.mxu0 0.0
        %493 = vmatprep.subr.mxu0 0.0
        %494 = vmatpush2.msra.mxu0 0.0
        %495 = vmatprep.subr.mxu0 0.0
        %496 = vmatpush2.msra.mxu0 0.0
        %497 = vmatprep.subr.mxu0 0.0
        %498 = vmatpush2.msra.mxu0 0.0
        %499 = vmatprep.subr.mxu0 0.0
        %500 = vmatpush2.msra.mxu0 0.0
        %501 = vmatprep.subr.mxu0 0.0
        %502 = vmatpush2.msra.mxu0 0.0
        %503 = vmatprep.subr.mxu0 0.0
        %504 = vmatpush2.msra.mxu0 0.0
        %505 = vmatprep.subr.mxu0 0.0
        %506 = vmatpush2.msra.mxu0 0.0
        %507 = vmatprep.subr.mxu0 0.0
        %508 = vmatpush2.msra.mxu0 0.0
        %509 = vmatprep.subr.mxu0 0.0
        %510 = vmatpush2.msra.mxu0 0.0
        %511 = vmatprep.subr.mxu0 0.0
        %512 = vmatpush2.msra.mxu0 0.0
        %513 = vmatprep.subr.mxu0 0.0
        %514 = vmatpush2.msra.mxu0 0.0
        %515 = vmatprep.subr.mxu0 0.0
        %516 = vmatpush2.msra.mxu0 0.0
        %517 = vmatprep.subr.mxu0 0.0
        %518 = vmatpush2.msra.mxu0 0.0
        %519 = vmatprep.subr.mxu0 0.0
        %520 = vmatpush2.msra.mxu0 0.0
        %521 = vmatprep.mubr.f32.mxu0 0.0
        %522 = vmatmul.mubr.f32.gmra.mxu0 %v455
        %v523 = vpop.f32.mrf.mxu0
        %v524 = vadd.f32 0.0, %v523
        %v525 = vpop.f32.mrf.mxu0
        %526 = vdwg.mxu0
        %v527 = vrcp.pop %v450
        %v528 = vmul.f32 %v524, %v527
        %v529 = vld [vmem:[#allocation7] sm:$0xff]
        %v531 = vsel %vm366, %v528, 0
        %533 = vmatprep.subr.mxu0 0.0
        %534 = vmatpush1.msra.mxu0 0.0
        %535 = vmatprep.subr.mxu0 0.0
        %536 = vmatpush1.msra.mxu0 0.0
        %537 = vmatprep.subr.mxu0 0.0
        %538 = vmatpush1.msra.mxu0 0.0
        %539 = vmatprep.subr.mxu0 0.0
        %540 = vmatpush1.msra.mxu0 0.0
        %541 = vmatprep.subr.mxu0 0.0
        %542 = vmatpush1.msra.mxu0 0.0
        %543 = vmatprep.subr.mxu0 0.0
        %544 = vmatpush1.msra.mxu0 0.0
        %545 = vmatprep.subr.mxu0 0.0
        %546 = vmatpush1.msra.mxu0 0.0
        %547 = vmatprep.subr.mxu0 0.0
        %548 = vmatpush1.msra.mxu0 0.0
        %549 = vmatprep.subr.mxu0 0.0
        %550 = vmatpush1.msra.mxu0 0.0
        %551 = vmatprep.subr.mxu0 0.0
        %552 = vmatpush1.msra.mxu0 0.0
        %553 = vmatprep.subr.mxu0 0.0
        %554 = vmatpush1.msra.mxu0 0.0
        %555 = vmatprep.subr.mxu0 0.0
        %556 = vmatpush1.msra.mxu0 0.0
        %557 = vmatprep.subr.mxu0 0.0
        %558 = vmatpush1.msra.mxu0 0.0
        %559 = vmatprep.subr.mxu0 0.0
        %560 = vmatpush1.msra.mxu0 0.0
        %561 = vmatprep.subr.mxu0 0.0
        %562 = vmatpush1.msra.mxu0 0.0
        %563 = vmatprep.subr.mxu0 0.0
        %564 = vmatpush1.msra.mxu0 %v529
        %565 = vmatprep.subr.mxu0 0.0
        %566 = vmatpush2.msra.mxu0 0.0
        %567 = vmatprep.subr.mxu0 0.0
        %568 = vmatpush2.msra.mxu0 0.0
        %569 = vmatprep.subr.mxu0 0.0
        %570 = vmatpush2.msra.mxu0 0.0
        %571 = vmatprep.subr.mxu0 0.0
        %572 = vmatpush2.msra.mxu0 0.0
        %573 = vmatprep.subr.mxu0 0.0
        %574 = vmatpush2.msra.mxu0 0.0
        %575 = vmatprep.subr.mxu0 0.0
        %576 = vmatpush2.msra.mxu0 0.0
        %577 = vmatprep.subr.mxu0 0.0
        %578 = vmatpush2.msra.mxu0 0.0
        %579 = vmatprep.subr.mxu0 0.0
        %580 = vmatpush2.msra.mxu0 0.0
        %581 = vmatprep.subr.mxu0 0.0
        %582 = vmatpush2.msra.mxu0 0.0
        %583 = vmatprep.subr.mxu0 0.0
        %584 = vmatpush2.msra.mxu0 0.0
        %585 = vmatprep.subr.mxu0 0.0
        %586 = vmatpush2.msra.mxu0 0.0
        %587 = vmatprep.subr.mxu0 0.0
        %588 = vmatpush2.msra.mxu0 0.0
        %589 = vmatprep.subr.mxu0 0.0
        %590 = vmatpush2.msra.mxu0 0.0
        %591 = vmatprep.subr.mxu0 0.0
        %592 = vmatpush2.msra.mxu0 0.0
        %593 = vmatprep.subr.mxu0 0.0
        %594 = vmatpush2.msra.mxu0 0.0
        %595 = vmatprep.subr.mxu0 0.0
        %596 = vmatpush2.msra.mxu0 0.0
        %597 = vmatprep.mubr.f32.mxu0 0.0
        %598 = vmatmul.mubr.f32.gmra.mxu0 %v531
        %v599 = vpop.f32.mrf.mxu0
        %v600 = vadd.f32 0.0, %v599
        %v601 = vpop.f32.mrf.mxu0
        %602 = vdwg.mxu0
        %v603 = vadd.f32 %v361, %v600
        %604 = vrot.lane.b32.xlu0 %v355, 120
        %v605 = vpop.permute.xlu0 %604
        %606 = vrot.lane.b32.xlu0 %v352, 88
        %v607 = vpop.permute.xlu0 %606
        %v608 = vsel %vm366, %v605, 0
        %v610 = vsel %vm366, %v607, 0
        %612 = vmatprep.subr.mxu0 0.0
        %613 = vmatpush1.xpose.msra.mxu0 0.0
        %614 = vmatprep.subr.mxu0 0.0
        %615 = vmatpush1.xpose.msra.mxu0 0.0
        %616 = vmatprep.subr.mxu0 0.0
        %617 = vmatpush1.xpose.msra.mxu0 0.0
        %618 = vmatprep.subr.mxu0 0.0
        %619 = vmatpush1.xpose.msra.mxu0 0.0
        %620 = vmatprep.subr.mxu0 0.0
        %621 = vmatpush1.xpose.msra.mxu0 0.0
        %622 = vmatprep.subr.mxu0 0.0
        %623 = vmatpush1.xpose.msra.mxu0 0.0
        %624 = vmatprep.subr.mxu0 0.0
        %625 = vmatpush1.xpose.msra.mxu0 0.0
        %626 = vmatprep.subr.mxu0 0.0
        %627 = vmatpush1.xpose.msra.mxu0 0.0
        %628 = vmatprep.subr.mxu0 0.0
        %629 = vmatpush1.xpose.msra.mxu0 0.0
        %630 = vmatprep.subr.mxu0 0.0
        %631 = vmatpush1.xpose.msra.mxu0 0.0
        %632 = vmatprep.subr.mxu0 0.0
        %633 = vmatpush1.xpose.msra.mxu0 0.0
        %634 = vmatprep.subr.mxu0 0.0
        %635 = vmatpush1.xpose.msra.mxu0 0.0
        %636 = vmatprep.subr.mxu0 0.0
        %637 = vmatpush1.xpose.msra.mxu0 0.0
        %638 = vmatprep.subr.mxu0 0.0
        %639 = vmatpush1.xpose.msra.mxu0 0.0
        %640 = vmatprep.subr.mxu0 0.0
        %641 = vmatpush1.xpose.msra.mxu0 0.0
        %642 = vmatprep.subr.mxu0 0.0
        %643 = vmatpush1.xpose.msra.mxu0 %v610
        %644 = vmatprep.subr.mxu0 0.0
        %645 = vmatpush2.xpose.msra.mxu0 0.0
        %646 = vmatprep.subr.mxu0 0.0
        %647 = vmatpush2.xpose.msra.mxu0 0.0
        %648 = vmatprep.subr.mxu0 0.0
        %649 = vmatpush2.xpose.msra.mxu0 0.0
        %650 = vmatprep.subr.mxu0 0.0
        %651 = vmatpush2.xpose.msra.mxu0 0.0
        %652 = vmatprep.subr.mxu0 0.0
        %653 = vmatpush2.xpose.msra.mxu0 0.0
        %654 = vmatprep.subr.mxu0 0.0
        %655 = vmatpush2.xpose.msra.mxu0 0.0
        %656 = vmatprep.subr.mxu0 0.0
        %657 = vmatpush2.xpose.msra.mxu0 0.0
        %658 = vmatprep.subr.mxu0 0.0
        %659 = vmatpush2.xpose.msra.mxu0 0.0
        %660 = vmatprep.subr.mxu0 0.0
        %661 = vmatpush2.xpose.msra.mxu0 0.0
        %662 = vmatprep.subr.mxu0 0.0
        %663 = vmatpush2.xpose.msra.mxu0 0.0
        %664 = vmatprep.subr.mxu0 0.0
        %665 = vmatpush2.xpose.msra.mxu0 0.0
        %666 = vmatprep.subr.mxu0 0.0
        %667 = vmatpush2.xpose.msra.mxu0 0.0
        %668 = vmatprep.subr.mxu0 0.0
        %669 = vmatpush2.xpose.msra.mxu0 0.0
        %670 = vmatprep.subr.mxu0 0.0
        %671 = vmatpush2.xpose.msra.mxu0 0.0
        %672 = vmatprep.subr.mxu0 0.0
        %673 = vmatpush2.xpose.msra.mxu0 0.0
        %674 = vmatprep.subr.mxu0 0.0
        %675 = vmatpush2.xpose.msra.mxu0 0.0
        %676 = vmatprep.mubr.f32.mxu0 0.0
        %677 = vmatmul.mubr.f32.gmra.mxu0 %v608
        %v678 = vpop.f32.mrf.mxu0
        %v679 = vadd.f32 0.0, %v678
        %v680 = vpop.f32.mrf.mxu0
        %681 = vdwg.mxu0
        %v682 = vsel %vm366, %v679, -inf
        %683 = vmax.xlane.f32.xlu0 %v682
        %v684 = vpop.xlane.xlu0 %683
        %v685 = vsub.f32 %v679, %v684
        %v686 = vmul.f32 %v685, 1.442695
        %v687 = vpow.pop %v686
        %v688 = vsel %vm366, %v687, 0.0
        %689 = vadd.xlane.f32.xlu0 %v688
        %v690 = vpop.xlane.xlu0 %689
        %691 = vrot.lane.b32.xlu0 %v352, 56
        %v692 = vpop.permute.xlu0 %691
        %v695 = vsel %vm366, %v687, 0
        %697 = vmatprep.subr.mxu0 0.0
        %698 = vmatpush1.msra.mxu0 0.0
        %699 = vmatprep.subr.mxu0 0.0
        %700 = vmatpush1.msra.mxu0 0.0
        %701 = vmatprep.subr.mxu0 0.0
        %702 = vmatpush1.msra.mxu0 0.0
        %703 = vmatprep.subr.mxu0 0.0
        %704 = vmatpush1.msra.mxu0 0.0
        %705 = vmatprep.subr.mxu0 0.0
        %706 = vmatpush1.msra.mxu0 0.0
        %707 = vmatprep.subr.mxu0 0.0
        %708 = vmatpush1.msra.mxu0 0.0
        %709 = vmatprep.subr.mxu0 0.0
        %710 = vmatpush1.msra.mxu0 0.0
        %711 = vmatprep.subr.mxu0 0.0
        %712 = vmatpush1.msra.mxu0 0.0
        %713 = vmatprep.subr.mxu0 0.0
        %714 = vmatpush1.msra.mxu0 0.0
        %715 = vmatprep.subr.mxu0 0.0
        %716 = vmatpush1.msra.mxu0 0.0
        %717 = vmatprep.subr.mxu0 0.0
        %718 = vmatpush1.msra.mxu0 0.0
        %719 = vmatprep.subr.mxu0 0.0
        %720 = vmatpush1.msra.mxu0 0.0
        %721 = vmatprep.subr.mxu0 0.0
        %722 = vmatpush1.msra.mxu0 0.0
        %723 = vmatprep.subr.mxu0 0.0
        %724 = vmatpush1.msra.mxu0 0.0
        %725 = vmatprep.subr.mxu0 0.0
        %726 = vmatpush1.msra.mxu0 0.0
        %727 = vmatprep.subr.mxu0 0.0
        %728 = vmatpush1.msra.mxu0 %v692
        %729 = vmatprep.subr.mxu0 0.0
        %730 = vmatpush2.msra.mxu0 0.0
        %731 = vmatprep.subr.mxu0 0.0
        %732 = vmatpush2.msra.mxu0 0.0
        %733 = vmatprep.subr.mxu0 0.0
        %734 = vmatpush2.msra.mxu0 0.0
        %735 = vmatprep.subr.mxu0 0.0
        %736 = vmatpush2.msra.mxu0 0.0
        %737 = vmatprep.subr.mxu0 0.0
        %738 = vmatpush2.msra.mxu0 0.0
        %739 = vmatprep.subr.mxu0 0.0
        %740 = vmatpush2.msra.mxu0 0.0
        %741 = vmatprep.subr.mxu0 0.0
        %742 = vmatpush2.msra.mxu0 0.0
        %743 = vmatprep.subr.mxu0 0.0
        %744 = vmatpush2.msra.mxu0 0.0
        %745 = vmatprep.subr.mxu0 0.0
        %746 = vmatpush2.msra.mxu0 0.0
        %747 = vmatprep.subr.mxu0 0.0
        %748 = vmatpush2.msra.mxu0 0.0
        %749 = vmatprep.subr.mxu0 0.0
        %750 = vmatpush2.msra.mxu0 0.0
        %751 = vmatprep.subr.mxu0 0.0
        %752 = vmatpush2.msra.mxu0 0.0
        %753 = vmatprep.subr.mxu0 0.0
        %754 = vmatpush2.msra.mxu0 0.0
        %755 = vmatprep.subr.mxu0 0.0
        %756 = vmatpush2.msra.mxu0 0.0
        %757 = vmatprep.subr.mxu0 0.0
        %758 = vmatpush2.msra.mxu0 0.0
        %759 = vmatprep.subr.mxu0 0.0
        %760 = vmatpush2.msra.mxu0 0.0
        %761 = vmatprep.mubr.f32.mxu0 0.0
        %762 = vmatmul.mubr.f32.gmra.mxu0 %v695
        %v763 = vpop.f32.mrf.mxu0
        %v764 = vadd.f32 0.0, %v763
        %v765 = vpop.f32.mrf.mxu0
        %766 = vdwg.mxu0
        %v767 = vrcp.pop %v690
        %v768 = vmul.f32 %v764, %v767
        %v769 = vld [vmem:[#allocation7 + $0x8] sm:$0xff]
        %v771 = vsel %vm366, %v768, 0
        %773 = vmatprep.subr.mxu0 0.0
        %774 = vmatpush1.msra.mxu0 0.0
        %775 = vmatprep.subr.mxu0 0.0
        %776 = vmatpush1.msra.mxu0 0.0
        %777 = vmatprep.subr.mxu0 0.0
        %778 = vmatpush1.msra.mxu0 0.0
        %779 = vmatprep.subr.mxu0 0.0
        %780 = vmatpush1.msra.mxu0 0.0
        %781 = vmatprep.subr.mxu0 0.0
        %782 = vmatpush1.msra.mxu0 0.0
        %783 = vmatprep.subr.mxu0 0.0
        %784 = vmatpush1.msra.mxu0 0.0
        %785 = vmatprep.subr.mxu0 0.0
        %786 = vmatpush1.msra.mxu0 0.0
        %787 = vmatprep.subr.mxu0 0.0
        %788 = vmatpush1.msra.mxu0 0.0
        %789 = vmatprep.subr.mxu0 0.0
        %790 = vmatpush1.msra.mxu0 0.0
        %791 = vmatprep.subr.mxu0 0.0
        %792 = vmatpush1.msra.mxu0 0.0
        %793 = vmatprep.subr.mxu0 0.0
        %794 = vmatpush1.msra.mxu0 0.0
        %795 = vmatprep.subr.mxu0 0.0
        %796 = vmatpush1.msra.mxu0 0.0
        %797 = vmatprep.subr.mxu0 0.0
        %798 = vmatpush1.msra.mxu0 0.0
        %799 = vmatprep.subr.mxu0 0.0
        %800 = vmatpush1.msra.mxu0 0.0
        %801 = vmatprep.subr.mxu0 0.0
        %802 = vmatpush1.msra.mxu0 0.0
        %803 = vmatprep.subr.mxu0 0.0
        %804 = vmatpush1.msra.mxu0 %v769
        %805 = vmatprep.subr.mxu0 0.0
        %806 = vmatpush2.msra.mxu0 0.0
        %807 = vmatprep.subr.mxu0 0.0
        %808 = vmatpush2.msra.mxu0 0.0
        %809 = vmatprep.subr.mxu0 0.0
        %810 = vmatpush2.msra.mxu0 0.0
        %811 = vmatprep.subr.mxu0 0.0
        %812 = vmatpush2.msra.mxu0 0.0
        %813 = vmatprep.subr.mxu0 0.0
        %814 = vmatpush2.msra.mxu0 0.0
        %815 = vmatprep.subr.mxu0 0.0
        %816 = vmatpush2.msra.mxu0 0.0
        %817 = vmatprep.subr.mxu0 0.0
        %818 = vmatpush2.msra.mxu0 0.0
        %819 = vmatprep.subr.mxu0 0.0
        %820 = vmatpush2.msra.mxu0 0.0
        %821 = vmatprep.subr.mxu0 0.0
        %822 = vmatpush2.msra.mxu0 0.0
        %823 = vmatprep.subr.mxu0 0.0
        %824 = vmatpush2.msra.mxu0 0.0
        %825 = vmatprep.subr.mxu0 0.0
        %826 = vmatpush2.msra.mxu0 0.0
        %827 = vmatprep.subr.mxu0 0.0
        %828 = vmatpush2.msra.mxu0 0.0
        %829 = vmatprep.subr.mxu0 0.0
        %830 = vmatpush2.msra.mxu0 0.0
        %831 = vmatprep.subr.mxu0 0.0
        %832 = vmatpush2.msra.mxu0 0.0
        %833 = vmatprep.subr.mxu0 0.0
        %834 = vmatpush2.msra.mxu0 0.0
        %835 = vmatprep.subr.mxu0 0.0
        %836 = vmatpush2.msra.mxu0 0.0
        %837 = vmatprep.mubr.f32.mxu0 0.0
        %838 = vmatmul.mubr.f32.gmra.mxu0 %v771
        %v839 = vpop.f32.mrf.mxu0
        %v840 = vadd.f32 0.0, %v839
        %v841 = vpop.f32.mrf.mxu0
        %842 = vdwg.mxu0
        %v843 = vadd.f32 %v603, %v840
        %844 = vrot.lane.b32.xlu0 %v355, 112
        %v845 = vpop.permute.xlu0 %844
        %846 = vrot.lane.b32.xlu0 %v352, 80
        %v847 = vpop.permute.xlu0 %846
        %v848 = vsel %vm366, %v845, 0
        %v850 = vsel %vm366, %v847, 0
        %852 = vmatprep.subr.mxu0 0.0
        %853 = vmatpush1.xpose.msra.mxu0 0.0
        %854 = vmatprep.subr.mxu0 0.0
        %855 = vmatpush1.xpose.msra.mxu0 0.0
        %856 = vmatprep.subr.mxu0 0.0
        %857 = vmatpush1.xpose.msra.mxu0 0.0
        %858 = vmatprep.subr.mxu0 0.0
        %859 = vmatpush1.xpose.msra.mxu0 0.0
        %860 = vmatprep.subr.mxu0 0.0
        %861 = vmatpush1.xpose.msra.mxu0 0.0
        %862 = vmatprep.subr.mxu0 0.0
        %863 = vmatpush1.xpose.msra.mxu0 0.0
        %864 = vmatprep.subr.mxu0 0.0
        %865 = vmatpush1.xpose.msra.mxu0 0.0
        %866 = vmatprep.subr.mxu0 0.0
        %867 = vmatpush1.xpose.msra.mxu0 0.0
        %868 = vmatprep.subr.mxu0 0.0
        %869 = vmatpush1.xpose.msra.mxu0 0.0
        %870 = vmatprep.subr.mxu0 0.0
        %871 = vmatpush1.xpose.msra.mxu0 0.0
        %872 = vmatprep.subr.mxu0 0.0
        %873 = vmatpush1.xpose.msra.mxu0 0.0
        %874 = vmatprep.subr.mxu0 0.0
        %875 = vmatpush1.xpose.msra.mxu0 0.0
        %876 = vmatprep.subr.mxu0 0.0
        %877 = vmatpush1.xpose.msra.mxu0 0.0
        %878 = vmatprep.subr.mxu0 0.0
        %879 = vmatpush1.xpose.msra.mxu0 0.0
        %880 = vmatprep.subr.mxu0 0.0
        %881 = vmatpush1.xpose.msra.mxu0 0.0
        %882 = vmatprep.subr.mxu0 0.0
        %883 = vmatpush1.xpose.msra.mxu0 %v850
        %884 = vmatprep.subr.mxu0 0.0
        %885 = vmatpush2.xpose.msra.mxu0 0.0
        %886 = vmatprep.subr.mxu0 0.0
        %887 = vmatpush2.xpose.msra.mxu0 0.0
        %888 = vmatprep.subr.mxu0 0.0
        %889 = vmatpush2.xpose.msra.mxu0 0.0
        %890 = vmatprep.subr.mxu0 0.0
        %891 = vmatpush2.xpose.msra.mxu0 0.0
        %892 = vmatprep.subr.mxu0 0.0
        %893 = vmatpush2.xpose.msra.mxu0 0.0
        %894 = vmatprep.subr.mxu0 0.0
        %895 = vmatpush2.xpose.msra.mxu0 0.0
        %896 = vmatprep.subr.mxu0 0.0
        %897 = vmatpush2.xpose.msra.mxu0 0.0
        %898 = vmatprep.subr.mxu0 0.0
        %899 = vmatpush2.xpose.msra.mxu0 0.0
        %900 = vmatprep.subr.mxu0 0.0
        %901 = vmatpush2.xpose.msra.mxu0 0.0
        %902 = vmatprep.subr.mxu0 0.0
        %903 = vmatpush2.xpose.msra.mxu0 0.0
        %904 = vmatprep.subr.mxu0 0.0
        %905 = vmatpush2.xpose.msra.mxu0 0.0
        %906 = vmatprep.subr.mxu0 0.0
        %907 = vmatpush2.xpose.msra.mxu0 0.0
        %908 = vmatprep.subr.mxu0 0.0
        %909 = vmatpush2.xpose.msra.mxu0 0.0
        %910 = vmatprep.subr.mxu0 0.0
        %911 = vmatpush2.xpose.msra.mxu0 0.0
        %912 = vmatprep.subr.mxu0 0.0
        %913 = vmatpush2.xpose.msra.mxu0 0.0
        %914 = vmatprep.subr.mxu0 0.0
        %915 = vmatpush2.xpose.msra.mxu0 0.0
        %916 = vmatprep.mubr.f32.mxu0 0.0
        %917 = vmatmul.mubr.f32.gmra.mxu0 %v848
        %v918 = vpop.f32.mrf.mxu0
        %v919 = vadd.f32 0.0, %v918
        %v920 = vpop.f32.mrf.mxu0
        %921 = vdwg.mxu0
        %v922 = vsel %vm366, %v919, -inf
        %923 = vmax.xlane.f32.xlu0 %v922
        %v924 = vpop.xlane.xlu0 %923
        %v925 = vsub.f32 %v919, %v924
        %v926 = vmul.f32 %v925, 1.442695
        %v927 = vpow.pop %v926
        %v928 = vsel %vm366, %v927, 0.0
        %929 = vadd.xlane.f32.xlu0 %v928
        %v930 = vpop.xlane.xlu0 %929
        %931 = vrot.lane.b32.xlu0 %v352, 48
        %v932 = vpop.permute.xlu0 %931
        %v935 = vsel %vm366, %v927, 0
        %937 = vmatprep.subr.mxu0 0.0
        %938 = vmatpush1.msra.mxu0 0.0
        %939 = vmatprep.subr.mxu0 0.0
        %940 = vmatpush1.msra.mxu0 0.0
        %941 = vmatprep.subr.mxu0 0.0
        %942 = vmatpush1.msra.mxu0 0.0
        %943 = vmatprep.subr.mxu0 0.0
        %944 = vmatpush1.msra.mxu0 0.0
        %945 = vmatprep.subr.mxu0 0.0
        %946 = vmatpush1.msra.mxu0 0.0
        %947 = vmatprep.subr.mxu0 0.0
        %948 = vmatpush1.msra.mxu0 0.0
        %949 = vmatprep.subr.mxu0 0.0
        %950 = vmatpush1.msra.mxu0 0.0
        %951 = vmatprep.subr.mxu0 0.0
        %952 = vmatpush1.msra.mxu0 0.0
        %953 = vmatprep.subr.mxu0 0.0
        %954 = vmatpush1.msra.mxu0 0.0
        %955 = vmatprep.subr.mxu0 0.0
        %956 = vmatpush1.msra.mxu0 0.0
        %957 = vmatprep.subr.mxu0 0.0
        %958 = vmatpush1.msra.mxu0 0.0
        %959 = vmatprep.subr.mxu0 0.0
        %960 = vmatpush1.msra.mxu0 0.0
        %961 = vmatprep.subr.mxu0 0.0
        %962 = vmatpush1.msra.mxu0 0.0
        %963 = vmatprep.subr.mxu0 0.0
        %964 = vmatpush1.msra.mxu0 0.0
        %965 = vmatprep.subr.mxu0 0.0
        %966 = vmatpush1.msra.mxu0 0.0
        %967 = vmatprep.subr.mxu0 0.0
        %968 = vmatpush1.msra.mxu0 %v932
        %969 = vmatprep.subr.mxu0 0.0
        %970 = vmatpush2.msra.mxu0 0.0
        %971 = vmatprep.subr.mxu0 0.0
        %972 = vmatpush2.msra.mxu0 0.0
        %973 = vmatprep.subr.mxu0 0.0
        %974 = vmatpush2.msra.mxu0 0.0
        %975 = vmatprep.subr.mxu0 0.0
        %976 = vmatpush2.msra.mxu0 0.0
        %977 = vmatprep.subr.mxu0 0.0
        %978 = vmatpush2.msra.mxu0 0.0
        %979 = vmatprep.subr.mxu0 0.0
        %980 = vmatpush2.msra.mxu0 0.0
        %981 = vmatprep.subr.mxu0 0.0
        %982 = vmatpush2.msra.mxu0 0.0
        %983 = vmatprep.subr.mxu0 0.0
        %984 = vmatpush2.msra.mxu0 0.0
        %985 = vmatprep.subr.mxu0 0.0
        %986 = vmatpush2.msra.mxu0 0.0
        %987 = vmatprep.subr.mxu0 0.0
        %988 = vmatpush2.msra.mxu0 0.0
        %989 = vmatprep.subr.mxu0 0.0
        %990 = vmatpush2.msra.mxu0 0.0
        %991 = vmatprep.subr.mxu0 0.0
        %992 = vmatpush2.msra.mxu0 0.0
        %993 = vmatprep.subr.mxu0 0.0
        %994 = vmatpush2.msra.mxu0 0.0
        %995 = vmatprep.subr.mxu0 0.0
        %996 = vmatpush2.msra.mxu0 0.0
        %997 = vmatprep.subr.mxu0 0.0
        %998 = vmatpush2.msra.mxu0 0.0
        %999 = vmatprep.subr.mxu0 0.0
        %1000 = vmatpush2.msra.mxu0 0.0
        %1001 = vmatprep.mubr.f32.mxu0 0.0
        %1002 = vmatmul.mubr.f32.gmra.mxu0 %v935
        %v1003 = vpop.f32.mrf.mxu0
        %v1004 = vadd.f32 0.0, %v1003
        %v1005 = vpop.f32.mrf.mxu0
        %1006 = vdwg.mxu0
        %v1007 = vrcp.pop %v930
        %v1008 = vmul.f32 %v1004, %v1007
        %v1009 = vld [vmem:[#allocation7 + $0x10] sm:$0xff]
        %v1011 = vsel %vm366, %v1008, 0
        %1013 = vmatprep.subr.mxu0 0.0
        %1014 = vmatpush1.msra.mxu0 0.0
        %1015 = vmatprep.subr.mxu0 0.0
        %1016 = vmatpush1.msra.mxu0 0.0
        %1017 = vmatprep.subr.mxu0 0.0
        %1018 = vmatpush1.msra.mxu0 0.0
        %1019 = vmatprep.subr.mxu0 0.0
        %1020 = vmatpush1.msra.mxu0 0.0
        %1021 = vmatprep.subr.mxu0 0.0
        %1022 = vmatpush1.msra.mxu0 0.0
        %1023 = vmatprep.subr.mxu0 0.0
        %1024 = vmatpush1.msra.mxu0 0.0
        %1025 = vmatprep.subr.mxu0 0.0
        %1026 = vmatpush1.msra.mxu0 0.0
        %1027 = vmatprep.subr.mxu0 0.0
        %1028 = vmatpush1.msra.mxu0 0.0
        %1029 = vmatprep.subr.mxu0 0.0
        %1030 = vmatpush1.msra.mxu0 0.0
        %1031 = vmatprep.subr.mxu0 0.0
        %1032 = vmatpush1.msra.mxu0 0.0
        %1033 = vmatprep.subr.mxu0 0.0
        %1034 = vmatpush1.msra.mxu0 0.0
        %1035 = vmatprep.subr.mxu0 0.0
        %1036 = vmatpush1.msra.mxu0 0.0
        %1037 = vmatprep.subr.mxu0 0.0
        %1038 = vmatpush1.msra.mxu0 0.0
        %1039 = vmatprep.subr.mxu0 0.0
        %1040 = vmatpush1.msra.mxu0 0.0
        %1041 = vmatprep.subr.mxu0 0.0
        %1042 = vmatpush1.msra.mxu0 0.0
        %1043 = vmatprep.subr.mxu0 0.0
        %1044 = vmatpush1.msra.mxu0 %v1009
        %1045 = vmatprep.subr.mxu0 0.0
        %1046 = vmatpush2.msra.mxu0 0.0
        %1047 = vmatprep.subr.mxu0 0.0
        %1048 = vmatpush2.msra.mxu0 0.0
        %1049 = vmatprep.subr.mxu0 0.0
        %1050 = vmatpush2.msra.mxu0 0.0
        %1051 = vmatprep.subr.mxu0 0.0
        %1052 = vmatpush2.msra.mxu0 0.0
        %1053 = vmatprep.subr.mxu0 0.0
        %1054 = vmatpush2.msra.mxu0 0.0
        %1055 = vmatprep.subr.mxu0 0.0
        %1056 = vmatpush2.msra.mxu0 0.0
        %1057 = vmatprep.subr.mxu0 0.0
        %1058 = vmatpush2.msra.mxu0 0.0
        %1059 = vmatprep.subr.mxu0 0.0
        %1060 = vmatpush2.msra.mxu0 0.0
        %1061 = vmatprep.subr.mxu0 0.0
        %1062 = vmatpush2.msra.mxu0 0.0
        %1063 = vmatprep.subr.mxu0 0.0
        %1064 = vmatpush2.msra.mxu0 0.0
        %1065 = vmatprep.subr.mxu0 0.0
        %1066 = vmatpush2.msra.mxu0 0.0
        %1067 = vmatprep.subr.mxu0 0.0
        %1068 = vmatpush2.msra.mxu0 0.0
        %1069 = vmatprep.subr.mxu0 0.0
        %1070 = vmatpush2.msra.mxu0 0.0
        %1071 = vmatprep.subr.mxu0 0.0
        %1072 = vmatpush2.msra.mxu0 0.0
        %1073 = vmatprep.subr.mxu0 0.0
        %1074 = vmatpush2.msra.mxu0 0.0
        %1075 = vmatprep.subr.mxu0 0.0
        %1076 = vmatpush2.msra.mxu0 0.0
        %1077 = vmatprep.mubr.f32.mxu0 0.0
        %1078 = vmatmul.mubr.f32.gmra.mxu0 %v1011
        %v1079 = vpop.f32.mrf.mxu0
        %v1080 = vadd.f32 0.0, %v1079
        %v1081 = vpop.f32.mrf.mxu0
        %1082 = vdwg.mxu0
        %v1083 = vadd.f32 %v843, %v1080
        %1084 = vrot.lane.b32.xlu0 %v355, 104
        %v1085 = vpop.permute.xlu0 %1084
        %1086 = vrot.lane.b32.xlu0 %v352, 72
        %v1087 = vpop.permute.xlu0 %1086
        %v1088 = vsel %vm366, %v1085, 0
        %v1090 = vsel %vm366, %v1087, 0
        %1092 = vmatprep.subr.mxu0 0.0
        %1093 = vmatpush1.xpose.msra.mxu0 0.0
        %1094 = vmatprep.subr.mxu0 0.0
        %1095 = vmatpush1.xpose.msra.mxu0 0.0
        %1096 = vmatprep.subr.mxu0 0.0
        %1097 = vmatpush1.xpose.msra.mxu0 0.0
        %1098 = vmatprep.subr.mxu0 0.0
        %1099 = vmatpush1.xpose.msra.mxu0 0.0
        %1100 = vmatprep.subr.mxu0 0.0
        %1101 = vmatpush1.xpose.msra.mxu0 0.0
        %1102 = vmatprep.subr.mxu0 0.0
        %1103 = vmatpush1.xpose.msra.mxu0 0.0
        %1104 = vmatprep.subr.mxu0 0.0
        %1105 = vmatpush1.xpose.msra.mxu0 0.0
        %1106 = vmatprep.subr.mxu0 0.0
        %1107 = vmatpush1.xpose.msra.mxu0 0.0
        %1108 = vmatprep.subr.mxu0 0.0
        %1109 = vmatpush1.xpose.msra.mxu0 0.0
        %1110 = vmatprep.subr.mxu0 0.0
        %1111 = vmatpush1.xpose.msra.mxu0 0.0
        %1112 = vmatprep.subr.mxu0 0.0
        %1113 = vmatpush1.xpose.msra.mxu0 0.0
        %1114 = vmatprep.subr.mxu0 0.0
        %1115 = vmatpush1.xpose.msra.mxu0 0.0
        %1116 = vmatprep.subr.mxu0 0.0
        %1117 = vmatpush1.xpose.msra.mxu0 0.0
        %1118 = vmatprep.subr.mxu0 0.0
        %1119 = vmatpush1.xpose.msra.mxu0 0.0
        %1120 = vmatprep.subr.mxu0 0.0
        %1121 = vmatpush1.xpose.msra.mxu0 0.0
        %1122 = vmatprep.subr.mxu0 0.0
        %1123 = vmatpush1.xpose.msra.mxu0 %v1090
        %1124 = vmatprep.subr.mxu0 0.0
        %1125 = vmatpush2.xpose.msra.mxu0 0.0
        %1126 = vmatprep.subr.mxu0 0.0
        %1127 = vmatpush2.xpose.msra.mxu0 0.0
        %1128 = vmatprep.subr.mxu0 0.0
        %1129 = vmatpush2.xpose.msra.mxu0 0.0
        %1130 = vmatprep.subr.mxu0 0.0
        %1131 = vmatpush2.xpose.msra.mxu0 0.0
        %1132 = vmatprep.subr.mxu0 0.0
        %1133 = vmatpush2.xpose.msra.mxu0 0.0
        %1134 = vmatprep.subr.mxu0 0.0
        %1135 = vmatpush2.xpose.msra.mxu0 0.0
        %1136 = vmatprep.subr.mxu0 0.0
        %1137 = vmatpush2.xpose.msra.mxu0 0.0
        %1138 = vmatprep.subr.mxu0 0.0
        %1139 = vmatpush2.xpose.msra.mxu0 0.0
        %1140 = vmatprep.subr.mxu0 0.0
        %1141 = vmatpush2.xpose.msra.mxu0 0.0
        %1142 = vmatprep.subr.mxu0 0.0
        %1143 = vmatpush2.xpose.msra.mxu0 0.0
        %1144 = vmatprep.subr.mxu0 0.0
        %1145 = vmatpush2.xpose.msra.mxu0 0.0
        %1146 = vmatprep.subr.mxu0 0.0
        %1147 = vmatpush2.xpose.msra.mxu0 0.0
        %1148 = vmatprep.subr.mxu0 0.0
        %1149 = vmatpush2.xpose.msra.mxu0 0.0
        %1150 = vmatprep.subr.mxu0 0.0
        %1151 = vmatpush2.xpose.msra.mxu0 0.0
        %1152 = vmatprep.subr.mxu0 0.0
        %1153 = vmatpush2.xpose.msra.mxu0 0.0
        %1154 = vmatprep.subr.mxu0 0.0
        %1155 = vmatpush2.xpose.msra.mxu0 0.0
        %1156 = vmatprep.mubr.f32.mxu0 0.0
        %1157 = vmatmul.mubr.f32.gmra.mxu0 %v1088
        %v1158 = vpop.f32.mrf.mxu0
        %v1159 = vadd.f32 0.0, %v1158
        %v1160 = vpop.f32.mrf.mxu0
        %1161 = vdwg.mxu0
        %v1162 = vsel %vm366, %v1159, -inf
        %1163 = vmax.xlane.f32.xlu0 %v1162
        %v1164 = vpop.xlane.xlu0 %1163
        %v1165 = vsub.f32 %v1159, %v1164
        %v1166 = vmul.f32 %v1165, 1.442695
        %v1167 = vpow.pop %v1166
        %v1168 = vsel %vm366, %v1167, 0.0
        %1169 = vadd.xlane.f32.xlu0 %v1168
        %v1170 = vpop.xlane.xlu0 %1169
        %1171 = vrot.lane.b32.xlu0 %v352, 40
        %v1172 = vpop.permute.xlu0 %1171
        %v1175 = vsel %vm366, %v1167, 0
        %1177 = vmatprep.subr.mxu0 0.0
        %1178 = vmatpush1.msra.mxu0 0.0
        %1179 = vmatprep.subr.mxu0 0.0
        %1180 = vmatpush1.msra.mxu0 0.0
        %1181 = vmatprep.subr.mxu0 0.0
        %1182 = vmatpush1.msra.mxu0 0.0
        %1183 = vmatprep.subr.mxu0 0.0
        %1184 = vmatpush1.msra.mxu0 0.0
        %1185 = vmatprep.subr.mxu0 0.0
        %1186 = vmatpush1.msra.mxu0 0.0
        %1187 = vmatprep.subr.mxu0 0.0
        %1188 = vmatpush1.msra.mxu0 0.0
        %1189 = vmatprep.subr.mxu0 0.0
        %1190 = vmatpush1.msra.mxu0 0.0
        %1191 = vmatprep.subr.mxu0 0.0
        %1192 = vmatpush1.msra.mxu0 0.0
        %1193 = vmatprep.subr.mxu0 0.0
        %1194 = vmatpush1.msra.mxu0 0.0
        %1195 = vmatprep.subr.mxu0 0.0
        %1196 = vmatpush1.msra.mxu0 0.0
        %1197 = vmatprep.subr.mxu0 0.0
        %1198 = vmatpush1.msra.mxu0 0.0
        %1199 = vmatprep.subr.mxu0 0.0
        %1200 = vmatpush1.msra.mxu0 0.0
        %1201 = vmatprep.subr.mxu0 0.0
        %1202 = vmatpush1.msra.mxu0 0.0
        %1203 = vmatprep.subr.mxu0 0.0
        %1204 = vmatpush1.msra.mxu0 0.0
        %1205 = vmatprep.subr.mxu0 0.0
        %1206 = vmatpush1.msra.mxu0 0.0
        %1207 = vmatprep.subr.mxu0 0.0
        %1208 = vmatpush1.msra.mxu0 %v1172
        %1209 = vmatprep.subr.mxu0 0.0
        %1210 = vmatpush2.msra.mxu0 0.0
        %1211 = vmatprep.subr.mxu0 0.0
        %1212 = vmatpush2.msra.mxu0 0.0
        %1213 = vmatprep.subr.mxu0 0.0
        %1214 = vmatpush2.msra.mxu0 0.0
        %1215 = vmatprep.subr.mxu0 0.0
        %1216 = vmatpush2.msra.mxu0 0.0
        %1217 = vmatprep.subr.mxu0 0.0
        %1218 = vmatpush2.msra.mxu0 0.0
        %1219 = vmatprep.subr.mxu0 0.0
        %1220 = vmatpush2.msra.mxu0 0.0
        %1221 = vmatprep.subr.mxu0 0.0
        %1222 = vmatpush2.msra.mxu0 0.0
        %1223 = vmatprep.subr.mxu0 0.0
        %1224 = vmatpush2.msra.mxu0 0.0
        %1225 = vmatprep.subr.mxu0 0.0
        %1226 = vmatpush2.msra.mxu0 0.0
        %1227 = vmatprep.subr.mxu0 0.0
        %1228 = vmatpush2.msra.mxu0 0.0
        %1229 = vmatprep.subr.mxu0 0.0
        %1230 = vmatpush2.msra.mxu0 0.0
        %1231 = vmatprep.subr.mxu0 0.0
        %1232 = vmatpush2.msra.mxu0 0.0
        %1233 = vmatprep.subr.mxu0 0.0
        %1234 = vmatpush2.msra.mxu0 0.0
        %1235 = vmatprep.subr.mxu0 0.0
        %1236 = vmatpush2.msra.mxu0 0.0
        %1237 = vmatprep.subr.mxu0 0.0
        %1238 = vmatpush2.msra.mxu0 0.0
        %1239 = vmatprep.subr.mxu0 0.0
        %1240 = vmatpush2.msra.mxu0 0.0
        %1241 = vmatprep.mubr.f32.mxu0 0.0
        %1242 = vmatmul.mubr.f32.gmra.mxu0 %v1175
        %v1243 = vpop.f32.mrf.mxu0
        %v1244 = vadd.f32 0.0, %v1243
        %v1245 = vpop.f32.mrf.mxu0
        %1246 = vdwg.mxu0
        %v1247 = vrcp.pop %v1170
        %v1248 = vmul.f32 %v1244, %v1247
        %v1249 = vld [vmem:[#allocation7 + $0x18] sm:$0xff]
        %v1251 = vsel %vm366, %v1248, 0
        %1253 = vmatprep.subr.mxu0 0.0
        %1254 = vmatpush1.msra.mxu0 0.0
        %1255 = vmatprep.subr.mxu0 0.0
        %1256 = vmatpush1.msra.mxu0 0.0
        %1257 = vmatprep.subr.mxu0 0.0
        %1258 = vmatpush1.msra.mxu0 0.0
        %1259 = vmatprep.subr.mxu0 0.0
        %1260 = vmatpush1.msra.mxu0 0.0
        %1261 = vmatprep.subr.mxu0 0.0
        %1262 = vmatpush1.msra.mxu0 0.0
        %1263 = vmatprep.subr.mxu0 0.0
        %1264 = vmatpush1.msra.mxu0 0.0
        %1265 = vmatprep.subr.mxu0 0.0
        %1266 = vmatpush1.msra.mxu0 0.0
        %1267 = vmatprep.subr.mxu0 0.0
        %1268 = vmatpush1.msra.mxu0 0.0
        %1269 = vmatprep.subr.mxu0 0.0
        %1270 = vmatpush1.msra.mxu0 0.0
        %1271 = vmatprep.subr.mxu0 0.0
        %1272 = vmatpush1.msra.mxu0 0.0
        %1273 = vmatprep.subr.mxu0 0.0
        %1274 = vmatpush1.msra.mxu0 0.0
        %1275 = vmatprep.subr.mxu0 0.0
        %1276 = vmatpush1.msra.mxu0 0.0
        %1277 = vmatprep.subr.mxu0 0.0
        %1278 = vmatpush1.msra.mxu0 0.0
        %1279 = vmatprep.subr.mxu0 0.0
        %1280 = vmatpush1.msra.mxu0 0.0
        %1281 = vmatprep.subr.mxu0 0.0
        %1282 = vmatpush1.msra.mxu0 0.0
        %1283 = vmatprep.subr.mxu0 0.0
        %1284 = vmatpush1.msra.mxu0 %v1249
        %1285 = vmatprep.subr.mxu0 0.0
        %1286 = vmatpush2.msra.mxu0 0.0
        %1287 = vmatprep.subr.mxu0 0.0
        %1288 = vmatpush2.msra.mxu0 0.0
        %1289 = vmatprep.subr.mxu0 0.0
        %1290 = vmatpush2.msra.mxu0 0.0
        %1291 = vmatprep.subr.mxu0 0.0
        %1292 = vmatpush2.msra.mxu0 0.0
        %1293 = vmatprep.subr.mxu0 0.0
        %1294 = vmatpush2.msra.mxu0 0.0
        %1295 = vmatprep.subr.mxu0 0.0
        %1296 = vmatpush2.msra.mxu0 0.0
        %1297 = vmatprep.subr.mxu0 0.0
        %1298 = vmatpush2.msra.mxu0 0.0
        %1299 = vmatprep.subr.mxu0 0.0
        %1300 = vmatpush2.msra.mxu0 0.0
        %1301 = vmatprep.subr.mxu0 0.0
        %1302 = vmatpush2.msra.mxu0 0.0
        %1303 = vmatprep.subr.mxu0 0.0
        %1304 = vmatpush2.msra.mxu0 0.0
        %1305 = vmatprep.subr.mxu0 0.0
        %1306 = vmatpush2.msra.mxu0 0.0
        %1307 = vmatprep.subr.mxu0 0.0
        %1308 = vmatpush2.msra.mxu0 0.0
        %1309 = vmatprep.subr.mxu0 0.0
        %1310 = vmatpush2.msra.mxu0 0.0
        %1311 = vmatprep.subr.mxu0 0.0
        %1312 = vmatpush2.msra.mxu0 0.0
        %1313 = vmatprep.subr.mxu0 0.0
        %1314 = vmatpush2.msra.mxu0 0.0
        %1315 = vmatprep.subr.mxu0 0.0
        %1316 = vmatpush2.msra.mxu0 0.0
        %1317 = vmatprep.mubr.f32.mxu0 0.0
        %1318 = vmatmul.mubr.f32.gmra.mxu0 %v1251
        %v1319 = vpop.f32.mrf.mxu0
        %v1320 = vadd.f32 0.0, %v1319
        %v1321 = vpop.f32.mrf.mxu0
        %1322 = vdwg.mxu0
        %v1323 = vadd.f32 %v1083, %v1320
        %1324 = vst.msk [vmem:[%s268] sm:$0xff] %vm281, %v1323
        %s1325 = sand.u32 %s141, 1
        %s1326 = scalar_lea.sflag [#allocation4], %s1325
        %s1327 = sand.u32 %s141, 1
        %s1328 = smul.addr %s1327, 8
        %s1329 = scalar_lea.vmem [#allocation8], %s1328
        // Predicated region
        $region53: #{tpu_custom_call.1} parent=39 // pred_check
          %p1330 = pneg %p151
        $region54: #{tpu_custom_call.1} parent=39 // pred_check_branch
          %1332 = sbr.rel (%p1330) target = $region56
        $region55: #{tpu_custom_call.1} parent=39 // pred_region
          %s1334 = ssub.s32 128, 128
          %1335 = vsyncadd %s1326, %s1334
          %s1336 = smul.addr %s23, 128
          %s1337 = scalar_lea.hbm %s5, %s1336
          %s1339 = sshll.u32 %s1329, 4
          %s1340 = int_to_ptr.vmem [resolvable:$true] %s1339
          %1342 = dma.vmem_to_hbm [thread:$0]  %s1340, 128, %s1337, %s1326
        $region56: #{tpu_custom_call.1} parent=39 // pred_fallthru
          _
      $region40: #{tpu_custom_call.1} parent=5 // pred_fallthru
        _
      %p1343 = scmp.le.s32.totalorder 2, %s18
      // Predicated region
      $region57: #{tpu_custom_call.1} parent=5 // pred_check
        %p1344 = pneg %p1343
      $region58: #{tpu_custom_call.1} parent=5 // pred_check_branch
        %1346 = sbr.rel (%p1344) target = $region60
      $region59: #{tpu_custom_call.1} parent=5 // pred_region
        %s1347 = ssub.s32 %s18, 2
        // Predicated region
        $region61: #{tpu_custom_call.1} parent=59 // pred_check
          %p1348 = pneg %p157
        $region62: #{tpu_custom_call.1} parent=59 // pred_check_branch
          %1350 = sbr.rel (%p1348) target = $region64
        $region63: #{tpu_custom_call.1} parent=59 // pred_region
          %s1351 = sand.u32 %s142, 1
          %s1352 = scalar_lea.sflag [#allocation4], %s1351
          %s1353 = sand.u32 %s142, 1
          %s1354 = smul.addr %s1353, 8
          %s1355 = scalar_lea.vmem [#allocation8], %s1354
          %1356 = dma.done %s1352, 128
        $region64: #{tpu_custom_call.1} parent=59 // pred_fallthru
          _
      $region60: #{tpu_custom_call.1} parent=5 // pred_fallthru
        _
    $region6: #{tpu_custom_call.1} parent=1 // loop_footer
      %s22 = sadd.s32 1, %s18
    $region7: #{tpu_custom_call.1} parent=1 // loop_footer_branch
      %17 = sbr.rel target = $region3
    $region8: #{tpu_custom_call.1} parent=1 // loop_exit
      _
    %1357 = vsyncpa [#allocation3], 1
    %s1358 = scalar_lea.sflag [#allocation3], 1
    %1359 = vsyncpa %s1358, 1
    %1360 = vsyncpa [#allocation6], 1
    %1361 = vsyncpa [#allocation4], 1
    %s1362 = scalar_lea.sflag [#allocation4], 1
    %1363 = vsyncpa %s1362, 1

</llo_original>
